<compile_context>
chip_gen: v7x
topology: tpu7x:2x2x1
jax: 0.10.0
libtpu: 0.0.40
codegen_flags: <defaults>
</compile_context>

<pallas_src>
import functools

import jax
import jax.numpy as jnp
from jax import lax
from jax.experimental import pallas as pl
from jax.experimental.pallas import tpu as pltpu


def _cbam_kernel(x_ref, w1_ref, b1_ref, w2_ref, b2_ref, cw_ref, cb_ref,
                 mask_ref, o_ref, out1_ref, avgm_ref, maxm_ref, *, W):
    """One grid step = TB batch elements.

    x_ref/o_ref: (TB, C, H*W) native dtype.
    w1_ref: (mid, C), b1_ref: (1, mid, 1), w2_ref: (C, mid), b2_ref: (1, C, 1) f32.
    cw_ref: (18,) f32 SMEM, layout [cin*9 + (dy+1)*3 + (dx+1)] (cin0=avg, cin1=max).
    cb_ref: (1,)  f32 SMEM (conv bias).
    mask_ref: (9, H*W) f32 boundary masks (output coordinates).
    out1_ref: (TB, C, H*W) f32 scratch, avgm_ref/maxm_ref: (TB, H*W) f32 scratch.
    """
    TB, C, HW = x_ref.shape
    mid = w1_ref.shape[0]

    # Load + upcast the whole block exactly once.
    x = x_ref[...].astype(jnp.float32)                        # (TB, C, HW)

    # ---------------- channel attention (batched over TB) ----------------
    avg_p = jnp.mean(x, axis=2, keepdims=True)                # (TB, C, 1)
    max_p = jnp.max(x, axis=2, keepdims=True)                 # (TB, C, 1)
    pooled = jnp.concatenate([avg_p, max_p], axis=2)          # (TB, C, 2)

    # Shared MLP on all TB (avg, max) vector pairs via batched MXU matmuls,
    # producing the attention directly in (TB, C, 1) slab layout.
    w1b = jnp.broadcast_to(w1_ref[...], (TB, mid, C))
    h = lax.dot_general(w1b, pooled, (((2,), (1,)), ((0,), (0,))),
                        preferred_element_type=jnp.float32)
    h = jnp.maximum(h + b1_ref[...], 0.0)                     # (TB, mid, 2)
    w2b = jnp.broadcast_to(w2_ref[...], (TB, C, mid))
    m = lax.dot_general(w2b, h, (((2,), (1,)), ((0,), (0,))),
                        preferred_element_type=jnp.float32) + b2_ref[...]
    ca = jax.nn.sigmoid(m[:, :, 0:1] + m[:, :, 1:2])          # (TB, C, 1)

    # One full-block multiply; reused by the spatial path and the final store.
    out1_ref[...] = x * ca                                     # (TB, C, HW) f32

    # Channel-reduced maps assembled TB-dense (TB on sublanes, HW on lanes).
    for b in range(TB):
        slab = out1_ref[b]                                     # (C, HW)
        avgm_ref[b:b + 1, :] = jnp.mean(slab, axis=0, keepdims=True)
        maxm_ref[b:b + 1, :] = jnp.max(slab, axis=0, keepdims=True)
    avg_map = avgm_ref[...]                                    # (TB, HW)
    max_map = maxm_ref[...]                                    # (TB, HW)

    # -------- spatial attention: 3x3 SAME conv via 9 lane rolls (batched) ----
    acc = jnp.zeros((TB, HW), jnp.float32)
    for dy in (-1, 0, 1):
        for dx in (-1, 0, 1):
            t = (dy + 1) * 3 + (dx + 1)
            tap = cw_ref[t] * avg_map + cw_ref[9 + t] * max_map
            off = dy * W + dx
            if off != 0:
                tap = pltpu.roll(tap, shift=(-off) % HW, axis=1)
            # Boundary mask in OUTPUT coordinates, applied after the roll.
            acc = acc + mask_ref[t:t + 1, :] * tap
    sa = jax.nn.sigmoid(acc + cb_ref[0])                       # (TB, HW)

    # -------- apply spatial attention + store (dense (C, HW) slabs) ----------
    for b in range(TB):
        o_ref[b] = (out1_ref[b] * sa[b:b + 1, :]).astype(o_ref.dtype)


def _vmem_capacity_bytes():
    """Generation-aware VMEM capacity; conservative (v7x, 64 MiB) fallback."""
    try:
        return int(pltpu.get_tpu_info().vmem_capacity_bytes)
    except Exception:
        return 64 << 20


def _pick_batch_block(B, C, HW, elt_bytes, budget):
    """Largest batch block dividing B whose VMEM working set (double-buffered
    in/out blocks + f32 block temporaries) fits the budget.  Capped at B//2 so
    the 'parallel' batch axis always has >= 2 grid steps (v7x has 2 TCs), and
    at 64 to bound unrolled per-batch code size."""
    per_batch = C * HW * (4 * elt_bytes + 12) + (64 << 10)
    cap = max(1, min(B // 2 if B >= 2 else 1, 64))
    for tb in range(cap, 0, -1):
        if B % tb == 0 and tb * per_batch <= budget:
            return tb
    raise NotImplementedError(
        "CBAM feature map too large for VMEM at TB=1. "
        "TODO(synk): split H*W over a second grid axis (two-pass reduce/apply).")


def _conv_tap_masks(H, W):
    """(9, H*W) f32 boundary masks for the 3x3 SAME conv, output coordinates."""
    HW = H * W
    lin = jnp.arange(HW, dtype=jnp.int32)
    col = lin % W
    row = lin // W
    ones = jnp.ones((HW,), bool)
    ok_x = {-1: col >= 1, 0: ones, 1: col <= W - 2}
    ok_y = {-1: row >= 1, 0: ones, 1: row <= H - 2}
    rows = [(ok_y[dy] & ok_x[dx]).astype(jnp.float32)
            for dy in (-1, 0, 1) for dx in (-1, 0, 1)]
    return jnp.stack(rows, axis=0)


def cbam_forward(x_nchw, params):
    """params follow PyTorch conventions:
       w1 (mid, C), b1 (mid,), w2 (C, mid), b2 (C,),
       conv_w (1, 2, k, k), conv_b (1,)."""
    w1, b1, w2, b2, conv_w, conv_b = params
    B, C, H, W = x_nchw.shape
    mid = w1.shape[0]
    HW = H * W
    dtype = x_nchw.dtype
    elt = jnp.dtype(dtype).itemsize

    # Keep HBM traffic in the native dtype; upcast inside the kernel after DMA.
    x_flat = x_nchw.reshape(B, C, HW)

    vmem_cap = _vmem_capacity_bytes()
    TB = _pick_batch_block(B, C, HW, elt, budget=(vmem_cap * 2) // 5)
    masks = _conv_tap_masks(H, W)

    kernel = functools.partial(_cbam_kernel, W=W)

    cost = pl.CostEstimate(
        flops=int(4 * B * C * HW + 54 * B * HW + 8 * B * C * mid),
        transcendentals=int(B * (C + HW)),
        bytes_accessed=int(2 * B * C * HW * elt),
    )

    out_flat = pl.pallas_call(
        kernel,
        out_shape=jax.ShapeDtypeStruct((B, C, HW), dtype),
        grid=(B // TB,),
        in_specs=[
            pl.BlockSpec((TB, C, HW), lambda b: (b, 0, 0)),        # x block
            pl.BlockSpec((mid, C), lambda b: (0, 0)),              # w1
            pl.BlockSpec((1, mid, 1), lambda b: (0, 0, 0)),        # b1
            pl.BlockSpec((C, mid), lambda b: (0, 0)),              # w2
            pl.BlockSpec((1, C, 1), lambda b: (0, 0, 0)),          # b2
            pl.BlockSpec(memory_space=pltpu.MemorySpace.SMEM),     # conv w (18,)
            pl.BlockSpec(memory_space=pltpu.MemorySpace.SMEM),     # conv b (1,)
            pl.BlockSpec((9, HW), lambda b: (0, 0)),               # tap masks
        ],
        out_specs=pl.BlockSpec((TB, C, HW), lambda b: (b, 0, 0)),
        scratch_shapes=[
            pltpu.VMEM((TB, C, HW), jnp.float32),                  # out1 (ca * x)
            pltpu.VMEM((TB, HW), jnp.float32),                     # avg map
            pltpu.VMEM((TB, HW), jnp.float32),                     # max map
        ],
        compiler_params=pltpu.CompilerParams(
            dimension_semantics=("parallel",),
            vmem_limit_bytes=int((vmem_cap * 3) // 4)),
        cost_estimate=cost,
    )(x_flat,
      w1.astype(jnp.float32),
      b1.reshape(1, mid, 1).astype(jnp.float32),
      w2.astype(jnp.float32),
      b2.reshape(1, C, 1).astype(jnp.float32),
      conv_w.reshape(-1).astype(jnp.float32),
      conv_b.astype(jnp.float32),
      masks)

    return out_flat.reshape(B, C, H, W)


def cbam_reference(x, params):
    """Pure-JAX reference matching the PyTorch forward exactly."""
    w1, b1, w2, b2, conv_w, conv_b = params
    hi = lax.Precision.HIGHEST

    def mlp(v):  # (B, C) -> (B, C)
        h = jnp.maximum(jnp.dot(v, w1.T, precision=hi) + b1, 0.0)
        return jnp.dot(h, w2.T, precision=hi) + b2

    avg = jnp.mean(x, axis=(2, 3))
    mx = jnp.max(x, axis=(2, 3))
    ca = jax.nn.sigmoid(mlp(avg) + mlp(mx))[:, :, None, None]
    out1 = ca * x

    maps = jnp.concatenate([jnp.mean(out1, axis=1, keepdims=True),
                            jnp.max(out1, axis=1, keepdims=True)], axis=1)
    conv = lax.conv_general_dilated(maps, conv_w, window_strides=(1, 1),
                                    padding="SAME",
                                    dimension_numbers=("NCHW", "OIHW", "NCHW"),
                                    precision=hi)
    sa = jax.nn.sigmoid(conv + conv_b[None, :, None, None])
    return sa * out1


if __name__ == "__main__":
    C = 32
    reduction, k_size = 16, 3
    mid = C // reduction

    key = jax.random.PRNGKey(0)
    k1, k2, k3, k4, k5, k6, kx1, kx2 = jax.random.split(key, 8)

    # Deterministic synthetic parameters (PyTorch-convention shapes).
    w1 = jax.random.normal(k1, (mid, C), jnp.float32) * 0.2    # Linear(C, mid).weight
    b1 = jax.random.normal(k2, (mid,), jnp.float32) * 0.1
    w2 = jax.random.normal(k3, (C, mid), jnp.float32) * 0.2    # Linear(mid, C).weight
    b2 = jax.random.normal(k4, (C,), jnp.float32) * 0.1
    conv_w = jax.random.normal(k5, (1, 2, k_size, k_size), jnp.float32) * 0.2
    conv_b = jax.random.normal(k6, (1,), jnp.float32) * 0.1
    params = (w1, b1, w2, b2, conv_w, conv_b)

    # Square and non-square spatial cases (validates the roll/mask conv logic).
    for kk, (B, H, W) in ((kx1, (2, 16, 16)), (kx2, (2, 8, 16))):
        x = jax.random.normal(kk, (B, C, H, W), jnp.float32)
        out = jax.block_until_ready(cbam_forward(x, params))
        ref = cbam_reference(x, params)
        assert out.shape == x.shape
        assert jnp.allclose(out, ref, atol=1e-2, rtol=1e-2), \
            f"mismatch vs reference for shape {(B, C, H, W)}"

    print("KERNEL_OK")
</pallas_src>

<mosaic_0001>
module attributes {stable_mosaic.version = 11 : i64} {
  func.func @_cbam_kernel(%arg0: i32, %arg1: memref<1x32x256xf32, #tpu.memory_space<vmem>>, %arg2: memref<2x32xf32, #tpu.memory_space<vmem>>, %arg3: memref<1x2x1xf32, #tpu.memory_space<vmem>>, %arg4: memref<32x2xf32, #tpu.memory_space<vmem>>, %arg5: memref<1x32x1xf32, #tpu.memory_space<vmem>>, %arg6: memref<18xf32, #tpu.memory_space<smem>>, %arg7: memref<1xf32, #tpu.memory_space<smem>>, %arg8: memref<9x256xf32, #tpu.memory_space<vmem>>, %arg9: memref<1x32x256xf32, #tpu.memory_space<vmem>>, %arg10: memref<1x32x256xf32, #tpu.memory_space<vmem>>, %arg11: memref<1x256xf32, #tpu.memory_space<vmem>>, %arg12: memref<1x256xf32, #tpu.memory_space<vmem>>) attributes {dimension_semantics = [#tpu.dimension_semantics<parallel>], iteration_bounds = array<i64: 2>, scalar_prefetch = 0 : i64, scratch_operands = 3 : i64, tpu.core_type = #tpu.core_type<tc>, window_params = [{transform_indices = @transform_0, window_bounds = array<i64: 1, 32, 256>}, {pipeline_mode = #tpu.pipeline_mode<synchronous>, transform_indices = @transform_1, window_bounds = array<i64: 2, 32>}, {pipeline_mode = #tpu.pipeline_mode<synchronous>, transform_indices = @transform_2, window_bounds = array<i64: 1, 2, 1>}, {pipeline_mode = #tpu.pipeline_mode<synchronous>, transform_indices = @transform_3, window_bounds = array<i64: 32, 2>}, {pipeline_mode = #tpu.pipeline_mode<synchronous>, transform_indices = @transform_4, window_bounds = array<i64: 1, 32, 1>}, {transform_indices = @transform_5, window_bounds = array<i64: 18>}, {transform_indices = @transform_6, window_bounds = array<i64: 1>}, {pipeline_mode = #tpu.pipeline_mode<synchronous>, transform_indices = @transform_7, window_bounds = array<i64: 9, 256>}, {transform_indices = @transform_8, window_bounds = array<i64: 1, 32, 256>}]} {
    %c0 = arith.constant 0 : index
    %c0_0 = arith.constant 0 : index
    %c0_1 = arith.constant 0 : index
    %0 = vector.load %arg1[%c0, %c0_0, %c0_1] : memref<1x32x256xf32, #tpu.memory_space<vmem>>, vector<1x32x256xf32>
    %cst = arith.constant dense<0.000000e+00> : vector<1x32xf32>
    %1 = vector.multi_reduction <add>, %0, %cst [2] : vector<1x32x256xf32> to vector<1x32xf32>
    %2 = vector.shape_cast %1 : vector<1x32xf32> to vector<1x32x1xf32>
    %cst_2 = arith.constant 2.560000e+02 : f32
    %3 = vector.broadcast %cst_2 : f32 to vector<1x32x1xf32>
    %4 = arith.divf %2, %3 : vector<1x32x1xf32>
    %cst_3 = arith.constant dense<0xFF800000> : vector<1x32xf32>
    %5 = vector.multi_reduction <maximumf>, %0, %cst_3 [2] : vector<1x32x256xf32> to vector<1x32xf32>
    %6 = vector.shape_cast %5 : vector<1x32xf32> to vector<1x32x1xf32>
    %7 = tpu.concatenate %4, %6 in 2 : vector<1x32x1xf32>, vector<1x32x1xf32> -> vector<1x32x2xf32>
    %c0_4 = arith.constant 0 : index
    %c0_5 = arith.constant 0 : index
    %8 = vector.load %arg2[%c0_4, %c0_5] : memref<2x32xf32, #tpu.memory_space<vmem>>, vector<2x32xf32>
    %9 = vector.shape_cast %8 : vector<2x32xf32> to vector<1x2x32xf32>
    %cst_6 = arith.constant dense<0.000000e+00> : vector<1x2x2xf32>
    %10 = tpu.matmul %9, %7, %cst_6 {dimension_numbers = #tpu.dot_dimension_numbers<[2], [1], [1], [2], [0, 0, 0, 1, 1, 2], [0], [0]>} : vector<1x2x32xf32>, vector<1x32x2xf32>, vector<1x2x2xf32> -> vector<1x2x2xf32>
    %c0_7 = arith.constant 0 : index
    %c0_8 = arith.constant 0 : index
    %c0_9 = arith.constant 0 : index
    %11 = vector.load %arg3[%c0_7, %c0_8, %c0_9] : memref<1x2x1xf32, #tpu.memory_space<vmem>>, vector<1x2x1xf32>
    %12 = vector.broadcast %11 : vector<1x2x1xf32> to vector<1x2x2xf32>
    %13 = arith.addf %10, %12 : vector<1x2x2xf32>
    %cst_10 = arith.constant 0.000000e+00 : f32
    %14 = vector.broadcast %cst_10 : f32 to vector<1x2x2xf32>
    %15 = arith.maximumf %13, %14 : vector<1x2x2xf32>
    %c0_11 = arith.constant 0 : index
    %c0_12 = arith.constant 0 : index
    %16 = vector.load %arg4[%c0_11, %c0_12] : memref<32x2xf32, #tpu.memory_space<vmem>>, vector<32x2xf32>
    %17 = vector.shape_cast %16 : vector<32x2xf32> to vector<1x32x2xf32>
    %cst_13 = arith.constant dense<0.000000e+00> : vector<1x32x2xf32>
    %18 = tpu.matmul %17, %15, %cst_13 {dimension_numbers = #tpu.dot_dimension_numbers<[2], [1], [1], [2], [0, 0, 0, 1, 1, 2], [0], [0]>} : vector<1x32x2xf32>, vector<1x2x2xf32>, vector<1x32x2xf32> -> vector<1x32x2xf32>
    %c0_14 = arith.constant 0 : index
    %c0_15 = arith.constant 0 : index
    %c0_16 = arith.constant 0 : index
    %19 = vector.load %arg5[%c0_14, %c0_15, %c0_16] : memref<1x32x1xf32, #tpu.memory_space<vmem>>, vector<1x32x1xf32>
    %20 = vector.broadcast %19 : vector<1x32x1xf32> to vector<1x32x2xf32>
    %21 = arith.addf %18, %20 : vector<1x32x2xf32>
    %22 = vector.extract_strided_slice %21 {offsets = [0, 0, 0], sizes = [1, 32, 1], strides = [1, 1, 1]} : vector<1x32x2xf32> to vector<1x32x1xf32>
    %23 = vector.extract_strided_slice %21 {offsets = [0, 0, 1], sizes = [1, 32, 1], strides = [1, 1, 1]} : vector<1x32x2xf32> to vector<1x32x1xf32>
    %24 = arith.addf %22, %23 : vector<1x32x1xf32>
    %25 = arith.negf %24 : vector<1x32x1xf32>
    %26 = math.exp %25 : vector<1x32x1xf32>
    %cst_17 = arith.constant 1.000000e+00 : f32
    %27 = vector.broadcast %cst_17 : f32 to vector<1x32x1xf32>
    %28 = arith.addf %27, %26 : vector<1x32x1xf32>
    %29 = arith.divf %27, %28 : vector<1x32x1xf32>
    %30 = vector.broadcast %29 : vector<1x32x1xf32> to vector<1x32x256xf32>
    %31 = arith.mulf %0, %30 : vector<1x32x256xf32>
    %c0_18 = arith.constant 0 : index
    %c0_19 = arith.constant 0 : index
    %c0_20 = arith.constant 0 : index
    %32 = vector.load %arg10[%c0_18, %c0_19, %c0_20] : memref<1x32x256xf32, #tpu.memory_space<vmem>>, vector<1x32x256xf32>
    tpu.vector_store %arg10[%c0_18, %c0_19, %c0_20], %31 {strides = array<i32>} : memref<1x32x256xf32, #tpu.memory_space<vmem>>, vector<1x32x256xf32>,
    %c0_21 = arith.constant 0 : index
    %c0_22 = arith.constant 0 : index
    %c0_23 = arith.constant 0 : index
    %33 = vector.load %arg10[%c0_21, %c0_22, %c0_23] : memref<1x32x256xf32, #tpu.memory_space<vmem>>, vector<1x32x256xf32>
    %34 = vector.shape_cast %33 : vector<1x32x256xf32> to vector<32x256xf32>
    %cst_24 = arith.constant dense<0.000000e+00> : vector<256xf32>
    %35 = vector.multi_reduction <add>, %34, %cst_24 [0] : vector<32x256xf32> to vector<256xf32>
    %36 = vector.shape_cast %35 : vector<256xf32> to vector<1x256xf32>
    %cst_25 = arith.constant 3.200000e+01 : f32
    %37 = vector.broadcast %cst_25 : f32 to vector<1x256xf32>
    %38 = arith.divf %36, %37 : vector<1x256xf32>
    %c0_26 = arith.constant 0 : index
    %c0_27 = arith.constant 0 : index
    %39 = vector.load %arg11[%c0_26, %c0_27] : memref<1x256xf32, #tpu.memory_space<vmem>>, vector<1x256xf32>
    tpu.vector_store %arg11[%c0_26, %c0_27], %38 {strides = array<i32>} : memref<1x256xf32, #tpu.memory_space<vmem>>, vector<1x256xf32>,
    %cst_28 = arith.constant dense<0xFF800000> : vector<256xf32>
    %40 = vector.multi_reduction <maximumf>, %34, %cst_28 [0] : vector<32x256xf32> to vector<256xf32>
    %41 = vector.shape_cast %40 : vector<256xf32> to vector<1x256xf32>
    %c0_29 = arith.constant 0 : index
    %c0_30 = arith.constant 0 : index
    %42 = vector.load %arg12[%c0_29, %c0_30] : memref<1x256xf32, #tpu.memory_space<vmem>>, vector<1x256xf32>
    tpu.vector_store %arg12[%c0_29, %c0_30], %41 {strides = array<i32>} : memref<1x256xf32, #tpu.memory_space<vmem>>, vector<1x256xf32>,
    %c0_31 = arith.constant 0 : index
    %c0_32 = arith.constant 0 : index
    %43 = vector.load %arg11[%c0_31, %c0_32] : memref<1x256xf32, #tpu.memory_space<vmem>>, vector<1x256xf32>
    %c0_33 = arith.constant 0 : index
    %c0_34 = arith.constant 0 : index
    %44 = vector.load %arg12[%c0_33, %c0_34] : memref<1x256xf32, #tpu.memory_space<vmem>>, vector<1x256xf32>
    %cst_35 = arith.constant 0.000000e+00 : f32
    %45 = vector.broadcast %cst_35 : f32 to vector<1x256xf32>
    %c0_36 = arith.constant 0 : index
    %46 = memref.load %arg6[%c0_36] : memref<18xf32, #tpu.memory_space<smem>>
    %47 = vector.broadcast %46 : f32 to vector<1x256xf32>
    %48 = arith.mulf %47, %43 : vector<1x256xf32>
    %c9 = arith.constant 9 : index
    %49 = memref.load %arg6[%c9] : memref<18xf32, #tpu.memory_space<smem>>
    %50 = vector.broadcast %49 : f32 to vector<1x256xf32>
    %51 = arith.mulf %50, %44 : vector<1x256xf32>
    %52 = arith.addf %48, %51 : vector<1x256xf32>
    %c17_i32 = arith.constant 17 : i32
    %53 = tpu.dynamic_rotate %52 by %c17_i32 dim 1 : vector<1x256xf32>, i32 -> vector<1x256xf32>
    %c0_37 = arith.constant 0 : index
    %c0_38 = arith.constant 0 : index
    %54 = vector.load %arg8[%c0_37, %c0_38] : memref<9x256xf32, #tpu.memory_space<vmem>>, vector<1x256xf32>
    %55 = arith.mulf %54, %53 : vector<1x256xf32>
    %56 = arith.addf %45, %55 : vector<1x256xf32>
    %c1 = arith.constant 1 : index
    %57 = memref.load %arg6[%c1] : memref<18xf32, #tpu.memory_space<smem>>
    %58 = vector.broadcast %57 : f32 to vector<1x256xf32>
    %59 = arith.mulf %58, %43 : vector<1x256xf32>
    %c10 = arith.constant 10 : index
    %60 = memref.load %arg6[%c10] : memref<18xf32, #tpu.memory_space<smem>>
    %61 = vector.broadcast %60 : f32 to vector<1x256xf32>
    %62 = arith.mulf %61, %44 : vector<1x256xf32>
    %63 = arith.addf %59, %62 : vector<1x256xf32>
    %c16_i32 = arith.constant 16 : i32
    %64 = tpu.dynamic_rotate %63 by %c16_i32 dim 1 : vector<1x256xf32>, i32 -> vector<1x256xf32>
    %c1_39 = arith.constant 1 : index
    %c0_40 = arith.constant 0 : index
    %65 = vector.load %arg8[%c1_39, %c0_40] : memref<9x256xf32, #tpu.memory_space<vmem>>, vector<1x256xf32>
    %66 = arith.mulf %65, %64 : vector<1x256xf32>
    %67 = arith.addf %56, %66 : vector<1x256xf32>
    %c2 = arith.constant 2 : index
    %68 = memref.load %arg6[%c2] : memref<18xf32, #tpu.memory_space<smem>>
    %69 = vector.broadcast %68 : f32 to vector<1x256xf32>
    %70 = arith.mulf %69, %43 : vector<1x256xf32>
    %c11 = arith.constant 11 : index
    %71 = memref.load %arg6[%c11] : memref<18xf32, #tpu.memory_space<smem>>
    %72 = vector.broadcast %71 : f32 to vector<1x256xf32>
    %73 = arith.mulf %72, %44 : vector<1x256xf32>
    %74 = arith.addf %70, %73 : vector<1x256xf32>
    %c15_i32 = arith.constant 15 : i32
    %75 = tpu.dynamic_rotate %74 by %c15_i32 dim 1 : vector<1x256xf32>, i32 -> vector<1x256xf32>
    %c2_41 = arith.constant 2 : index
    %c0_42 = arith.constant 0 : index
    %76 = vector.load %arg8[%c2_41, %c0_42] : memref<9x256xf32, #tpu.memory_space<vmem>>, vector<1x256xf32>
    %77 = arith.mulf %76, %75 : vector<1x256xf32>
    %78 = arith.addf %67, %77 : vector<1x256xf32>
    %c3 = arith.constant 3 : index
    %79 = memref.load %arg6[%c3] : memref<18xf32, #tpu.memory_space<smem>>
    %80 = vector.broadcast %79 : f32 to vector<1x256xf32>
    %81 = arith.mulf %80, %43 : vector<1x256xf32>
    %c12 = arith.constant 12 : index
    %82 = memref.load %arg6[%c12] : memref<18xf32, #tpu.memory_space<smem>>
    %83 = vector.broadcast %82 : f32 to vector<1x256xf32>
    %84 = arith.mulf %83, %44 : vector<1x256xf32>
    %85 = arith.addf %81, %84 : vector<1x256xf32>
    %c1_i32 = arith.constant 1 : i32
    %86 = tpu.dynamic_rotate %85 by %c1_i32 dim 1 : vector<1x256xf32>, i32 -> vector<1x256xf32>
    %c3_43 = arith.constant 3 : index
    %c0_44 = arith.constant 0 : index
    %87 = vector.load %arg8[%c3_43, %c0_44] : memref<9x256xf32, #tpu.memory_space<vmem>>, vector<1x256xf32>
    %88 = arith.mulf %87, %86 : vector<1x256xf32>
    %89 = arith.addf %78, %88 : vector<1x256xf32>
    %c4 = arith.constant 4 : index
    %90 = memref.load %arg6[%c4] : memref<18xf32, #tpu.memory_space<smem>>
    %91 = vector.broadcast %90 : f32 to vector<1x256xf32>
    %92 = arith.mulf %91, %43 : vector<1x256xf32>
    %c13 = arith.constant 13 : index
    %93 = memref.load %arg6[%c13] : memref<18xf32, #tpu.memory_space<smem>>
    %94 = vector.broadcast %93 : f32 to vector<1x256xf32>
    %95 = arith.mulf %94, %44 : vector<1x256xf32>
    %96 = arith.addf %92, %95 : vector<1x256xf32>
    %c4_45 = arith.constant 4 : index
    %c0_46 = arith.constant 0 : index
    %97 = vector.load %arg8[%c4_45, %c0_46] : memref<9x256xf32, #tpu.memory_space<vmem>>, vector<1x256xf32>
    %98 = arith.mulf %97, %96 : vector<1x256xf32>
    %99 = arith.addf %89, %98 : vector<1x256xf32>
    %c5 = arith.constant 5 : index
    %100 = memref.load %arg6[%c5] : memref<18xf32, #tpu.memory_space<smem>>
    %101 = vector.broadcast %100 : f32 to vector<1x256xf32>
    %102 = arith.mulf %101, %43 : vector<1x256xf32>
    %c14 = arith.constant 14 : index
    %103 = memref.load %arg6[%c14] : memref<18xf32, #tpu.memory_space<smem>>
    %104 = vector.broadcast %103 : f32 to vector<1x256xf32>
    %105 = arith.mulf %104, %44 : vector<1x256xf32>
    %106 = arith.addf %102, %105 : vector<1x256xf32>
    %c255_i32 = arith.constant 255 : i32
    %107 = tpu.dynamic_rotate %106 by %c255_i32 dim 1 : vector<1x256xf32>, i32 -> vector<1x256xf32>
    %c5_47 = arith.constant 5 : index
    %c0_48 = arith.constant 0 : index
    %108 = vector.load %arg8[%c5_47, %c0_48] : memref<9x256xf32, #tpu.memory_space<vmem>>, vector<1x256xf32>
    %109 = arith.mulf %108, %107 : vector<1x256xf32>
    %110 = arith.addf %99, %109 : vector<1x256xf32>
    %c6 = arith.constant 6 : index
    %111 = memref.load %arg6[%c6] : memref<18xf32, #tpu.memory_space<smem>>
    %112 = vector.broadcast %111 : f32 to vector<1x256xf32>
    %113 = arith.mulf %112, %43 : vector<1x256xf32>
    %c15 = arith.constant 15 : index
    %114 = memref.load %arg6[%c15] : memref<18xf32, #tpu.memory_space<smem>>
    %115 = vector.broadcast %114 : f32 to vector<1x256xf32>
    %116 = arith.mulf %115, %44 : vector<1x256xf32>
    %117 = arith.addf %113, %116 : vector<1x256xf32>
    %c241_i32 = arith.constant 241 : i32
    %118 = tpu.dynamic_rotate %117 by %c241_i32 dim 1 : vector<1x256xf32>, i32 -> vector<1x256xf32>
    %c6_49 = arith.constant 6 : index
    %c0_50 = arith.constant 0 : index
    %119 = vector.load %arg8[%c6_49, %c0_50] : memref<9x256xf32, #tpu.memory_space<vmem>>, vector<1x256xf32>
    %120 = arith.mulf %119, %118 : vector<1x256xf32>
    %121 = arith.addf %110, %120 : vector<1x256xf32>
    %c7 = arith.constant 7 : index
    %122 = memref.load %arg6[%c7] : memref<18xf32, #tpu.memory_space<smem>>
    %123 = vector.broadcast %122 : f32 to vector<1x256xf32>
    %124 = arith.mulf %123, %43 : vector<1x256xf32>
    %c16 = arith.constant 16 : index
    %125 = memref.load %arg6[%c16] : memref<18xf32, #tpu.memory_space<smem>>
    %126 = vector.broadcast %125 : f32 to vector<1x256xf32>
    %127 = arith.mulf %126, %44 : vector<1x256xf32>
    %128 = arith.addf %124, %127 : vector<1x256xf32>
    %c240_i32 = arith.constant 240 : i32
    %129 = tpu.dynamic_rotate %128 by %c240_i32 dim 1 : vector<1x256xf32>, i32 -> vector<1x256xf32>
    %c7_51 = arith.constant 7 : index
    %c0_52 = arith.constant 0 : index
    %130 = vector.load %arg8[%c7_51, %c0_52] : memref<9x256xf32, #tpu.memory_space<vmem>>, vector<1x256xf32>
    %131 = arith.mulf %130, %129 : vector<1x256xf32>
    %132 = arith.addf %121, %131 : vector<1x256xf32>
    %c8 = arith.constant 8 : index
    %133 = memref.load %arg6[%c8] : memref<18xf32, #tpu.memory_space<smem>>
    %134 = vector.broadcast %133 : f32 to vector<1x256xf32>
    %135 = arith.mulf %134, %43 : vector<1x256xf32>
    %c17 = arith.constant 17 : index
    %136 = memref.load %arg6[%c17] : memref<18xf32, #tpu.memory_space<smem>>
    %137 = vector.broadcast %136 : f32 to vector<1x256xf32>
    %138 = arith.mulf %137, %44 : vector<1x256xf32>
    %139 = arith.addf %135, %138 : vector<1x256xf32>
    %c239_i32 = arith.constant 239 : i32
    %140 = tpu.dynamic_rotate %139 by %c239_i32 dim 1 : vector<1x256xf32>, i32 -> vector<1x256xf32>
    %c8_53 = arith.constant 8 : index
    %c0_54 = arith.constant 0 : index
    %141 = vector.load %arg8[%c8_53, %c0_54] : memref<9x256xf32, #tpu.memory_space<vmem>>, vector<1x256xf32>
    %142 = arith.mulf %141, %140 : vector<1x256xf32>
    %143 = arith.addf %132, %142 : vector<1x256xf32>
    %c0_55 = arith.constant 0 : index
    %144 = memref.load %arg7[%c0_55] : memref<1xf32, #tpu.memory_space<smem>>
    %145 = vector.broadcast %144 : f32 to vector<1x256xf32>
    %146 = arith.addf %143, %145 : vector<1x256xf32>
    %147 = arith.negf %146 : vector<1x256xf32>
    %148 = math.exp %147 : vector<1x256xf32>
    %cst_56 = arith.constant 1.000000e+00 : f32
    %149 = vector.broadcast %cst_56 : f32 to vector<1x256xf32>
    %150 = arith.addf %149, %148 : vector<1x256xf32>
    %151 = arith.divf %149, %150 : vector<1x256xf32>
    %c0_57 = arith.constant 0 : index
    %c0_58 = arith.constant 0 : index
    %c0_59 = arith.constant 0 : index
    %152 = vector.load %arg10[%c0_57, %c0_58, %c0_59] : memref<1x32x256xf32, #tpu.memory_space<vmem>>, vector<1x32x256xf32>
    %153 = vector.shape_cast %152 : vector<1x32x256xf32> to vector<32x256xf32>
    %154 = vector.broadcast %151 : vector<1x256xf32> to vector<32x256xf32>
    %155 = arith.mulf %153, %154 : vector<32x256xf32>
    %c0_60 = arith.constant 0 : index
    %c0_61 = arith.constant 0 : index
    %c0_62 = arith.constant 0 : index
    %156 = vector.load %arg9[%c0_60, %c0_61, %c0_62] : memref<1x32x256xf32, #tpu.memory_space<vmem>>, vector<1x32x256xf32>
    %157 = vector.shape_cast %156 : vector<1x32x256xf32> to vector<32x256xf32>
    %158 = vector.shape_cast %155 : vector<32x256xf32> to vector<1x32x256xf32>
    tpu.vector_store %arg9[%c0_60, %c0_61, %c0_62], %158 {strides = array<i32>} : memref<1x32x256xf32, #tpu.memory_space<vmem>>, vector<1x32x256xf32>,
    return
  }
  func.func @transform_0(%arg0: i32) -> (i32, i32, i32) {
    %c0_i32 = arith.constant 0 : i32
    %c0_i32_0 = arith.constant 0 : i32
    %c0_i32_1 = arith.constant 0 : i32
    return %arg0, %c0_i32, %c0_i32_0 : i32, i32, i32
  }
  func.func @transform_1(%arg0: i32) -> (i32, i32) {
    %c0_i32 = arith.constant 0 : i32
    %c0_i32_0 = arith.constant 0 : i32
    %c0_i32_1 = arith.constant 0 : i32
    return %c0_i32, %c0_i32_0 : i32, i32
  }
  func.func @transform_2(%arg0: i32) -> (i32, i32, i32) {
    %c0_i32 = arith.constant 0 : i32
    %c0_i32_0 = arith.constant 0 : i32
    %c0_i32_1 = arith.constant 0 : i32
    %c0_i32_2 = arith.constant 0 : i32
    return %c0_i32, %c0_i32_0, %c0_i32_1 : i32, i32, i32
  }
  func.func @transform_3(%arg0: i32) -> (i32, i32) {
    %c0_i32 = arith.constant 0 : i32
    %c0_i32_0 = arith.constant 0 : i32
    %c0_i32_1 = arith.constant 0 : i32
    return %c0_i32, %c0_i32_0 : i32, i32
  }
  func.func @transform_4(%arg0: i32) -> (i32, i32, i32) {
    %c0_i32 = arith.constant 0 : i32
    %c0_i32_0 = arith.constant 0 : i32
    %c0_i32_1 = arith.constant 0 : i32
    %c0_i32_2 = arith.constant 0 : i32
    return %c0_i32, %c0_i32_0, %c0_i32_1 : i32, i32, i32
  }
  func.func @transform_5(%arg0: i32) -> i32 {
    %c0_i32 = arith.constant 0 : i32
    %c0_i32_0 = arith.constant 0 : i32
    return %c0_i32 : i32
  }
  func.func @transform_6(%arg0: i32) -> i32 {
    %c0_i32 = arith.constant 0 : i32
    %c0_i32_0 = arith.constant 0 : i32
    return %c0_i32 : i32
  }
  func.func @transform_7(%arg0: i32) -> (i32, i32) {
    %c0_i32 = arith.constant 0 : i32
    %c0_i32_0 = arith.constant 0 : i32
    %c0_i32_1 = arith.constant 0 : i32
    return %c0_i32, %c0_i32_0 : i32, i32
  }
  func.func @transform_8(%arg0: i32) -> (i32, i32, i32) {
    %c0_i32 = arith.constant 0 : i32
    %c0_i32_0 = arith.constant 0 : i32
    %c0_i32_1 = arith.constant 0 : i32
    return %arg0, %c0_i32, %c0_i32_0 : i32, i32, i32
  }
}

</mosaic_0001>

<llo_original>
// kernel: tpu_custom_call.1
$region0: #{tpu_custom_call.1}
  #allocation0 [shape = 'u32[]', space=smem, size = 0x4, offset = 0x4, fixed_abs, tag = 'smem constant byte address 0x4 - core index']
  #allocation1 [shape = 'u32[144,128]{1,0:T(1,128)}', space=vmem, size = 0x12000, scoped, tag = 'internal scratch']
  #allocation2 [shape = 'f32[1,32,256]{2,1,0:T(8,128)}', space=vmem, size = 0x8000, scoped, tag = 'scratch operand']
  #allocation3 [shape = 'f32[1,256]{1,0:T(1,128)}', space=vmem, size = 0x400, scoped, tag = 'scratch operand']
  #allocation4 [shape = 'f32[1,256]{1,0:T(1,128)}', space=vmem, size = 0x400, scoped, tag = 'scratch operand']
  #allocation5 [shape = 'f32[1]{0:T(128)S(6)}', space=smem, size = 0x200, scoped, tag = 'scoped memory for tpu_custom_call.1']
  %s0 = inlined_call_operand.hbm [shape: f32[2,32,256], index: 0, kind: input, shape index: {}]
  %s1 = inlined_call_operand.vmem [shape: f32[2,32], index: 1, kind: input, shape index: {}]
  %s2 = inlined_call_operand.vmem [shape: f32[1,2,1], index: 2, kind: input, shape index: {}]
  %s3 = inlined_call_operand.vmem [shape: f32[32,2], index: 3, kind: input, shape index: {}]
  %s4 = inlined_call_operand.vmem [shape: f32[1,32,1], index: 4, kind: input, shape index: {}]
  %s5 = inlined_call_operand.vmem [shape: f32[18], index: 5, kind: input, shape index: {}]
  %s6 = inlined_call_operand.<no memory space> [shape: f32[1], index: 6, kind: input, shape index: {}]
  %s7 = inlined_call_operand.vmem [shape: f32[9,256], index: 7, kind: input, shape index: {}]
  %s8 = inlined_call_operand.hbm [shape: f32[2,32,256], index: 8, kind: output, shape index: {}]
  %s9 = sld [smem:[#allocation0]]
  $region73: #{tpu_custom_call.1} parent=0
    _
  %s11 = ssub.s32 1, %s9
  %s12 = scalar_select 0, %s11, %s9
  %13 = sst [smem:[#allocation5]] %s6
  $region1: #{tpu_custom_call.1} parent=0
    #allocation6 [shape = 'u8[65536]{0}', space=vmem, size = 0x10000, scoped, tag = 'input window, operand 0']
    #allocation7 [shape = 's32[2]{0}', space=sflag, size = 0x8, scoped, tag = 'scoped memory for tpu_custom_call.1']
    #allocation8 [shape = 's32[2]{0}', space=sflag, size = 0x8, scoped, tag = 'scoped memory for tpu_custom_call.1']
    #allocation9 [shape = 's32[2]{0}', space=sflag, size = 0x8, scoped, tag = 'scoped memory for tpu_custom_call.1']
    #allocation10 [shape = 'u8[512]{0}', space=smem, size = 0x200, scoped, tag = 'input window, operand 5, single buffered']
    #allocation11 [shape = 'u8[65536]{0}', space=vmem, size = 0x10000, scoped, tag = 'output window, operand 0']
    %14 = vsyncpa [#allocation7], 0
    %s15 = scalar_lea.sflag [#allocation7], 1
    %16 = vsyncpa %s15, 0
    %17 = vsyncpa [#allocation9], 0
    %18 = vsyncpa [#allocation8], 0
    %s19 = scalar_lea.sflag [#allocation8], 1
    %20 = vsyncpa %s19, 0
    loop: start=0, step=1, limit=4
    $region2: #{tpu_custom_call.1} parent=1 // loop_pre_header
      _
    $region3: #{tpu_custom_call.1} parent=1 // loop_header
      %s22 = sphi 0, %s26
      %p23 = scmp.ge.s32.totalorder %s22, 4
      %s32 = sphi 0, %s34
      %s35 = sphi 0, %s32
      %s36 = sphi 0, %s35
      %s52 = sphi 0, %s36
      %s56 = sphi 0, %s56
      %s58 = sphi 0, %s56
      %s59 = sphi 0, %s58
      %s73 = sphi 0, %s59
      %s77 = sphi 0, %s77
      %s79 = sphi 0, %s77
      %s80 = sphi 0, %s79
      %s94 = sphi 0, %s80
      %s98 = sphi 0, %s98
      %s100 = sphi 0, %s98
      %s101 = sphi 0, %s100
      %s115 = sphi 0, %s101
      %s119 = sphi 0, %s119
      %s121 = sphi 0, %s119
      %s122 = sphi 0, %s121
      %s136 = sphi 0, %s122
      %s140 = sphi 0, %s140
      %s142 = sphi 0, %s140
      %s143 = sphi 0, %s142
      %s157 = sphi 0, %s143
      %s161 = sphi 0, %s161
      %s163 = sphi 0, %s161
      %s164 = sphi 0, %s163
      %s178 = sphi 0, %s164
      %s182 = sphi 0, %s182
      %s184 = sphi 0, %s182
      %s185 = sphi 0, %s184
      %s199 = sphi 0, %s185
      %s205 = sphi 0, %s207
      %s208 = sphi 0, %s205
      %s209 = sphi 0, %s208
      %s225 = sphi 0, %s209
    $region4: #{tpu_custom_call.1} parent=1 // loop_header_branch
      %25 = sbr.rel (%p23) target = $region8
    $region5: #{tpu_custom_call.1} parent=1 // loop_body
      %s27 = ssub.s32 %s22, 1
      %s28 = ssub.s32 %s22, 2
      %s29 = sadd.s32 %s22, 1
      %s30 = ssub.s32 %s22, %s29
      %p31 = scmp.eq.s32.totalorder %s30, 0
      %s33 = sadd.s32 %s32, 1
      %s34 = scalar_select %p31, %s32, %s33
      %p37 = pneg %p31
      %p38 = scmp.eq.s32.totalorder %s22, 1
      %p39 = por %p37, %p38
      %p40 = scmp.ne.s32.totalorder %s32, %s35
      %p41 = scmp.eq.s32.totalorder %s22, 0
      %p42 = por %p40, %p41
      %p43 = scmp.ne.s32.totalorder %s32, %s35
      %p44 = scmp.eq.s32.totalorder %s27, 1
      %p45 = por %p43, %p44
      %p46 = scmp.ne.s32.totalorder %s35, %s36
      %p47 = scmp.eq.s32.totalorder %s27, 0
      %p48 = por %p46, %p47
      %p49 = scmp.ne.s32.totalorder %s35, %s36
      %p50 = scmp.eq.s32.totalorder %s28, 1
      %p51 = por %p49, %p50
      %p53 = scmp.ne.s32.totalorder %s36, %s52
      %p54 = scmp.eq.s32.totalorder %s28, 0
      %p55 = por %p53, %p54
      %s57 = sadd.s32 %s56, 1
      %p60 = scmp.eq.s32.totalorder %s22, 1
      %p61 = scmp.ne.s32.totalorder %s56, %s58
      %p62 = scmp.eq.s32.totalorder %s22, 0
      %p63 = por %p61, %p62
      %p64 = scmp.ne.s32.totalorder %s56, %s58
      %p65 = scmp.eq.s32.totalorder %s27, 1
      %p66 = por %p64, %p65
      %p67 = scmp.ne.s32.totalorder %s58, %s59
      %p68 = scmp.eq.s32.totalorder %s27, 0
      %p69 = por %p67, %p68
      %p70 = scmp.ne.s32.totalorder %s58, %s59
      %p71 = scmp.eq.s32.totalorder %s28, 1
      %p72 = por %p70, %p71
      %p74 = scmp.ne.s32.totalorder %s59, %s73
      %p75 = scmp.eq.s32.totalorder %s28, 0
      %p76 = por %p74, %p75
      %s78 = sadd.s32 %s77, 1
      %p81 = scmp.eq.s32.totalorder %s22, 1
      %p82 = scmp.ne.s32.totalorder %s77, %s79
      %p83 = scmp.eq.s32.totalorder %s22, 0
      %p84 = por %p82, %p83
      %p85 = scmp.ne.s32.totalorder %s77, %s79
      %p86 = scmp.eq.s32.totalorder %s27, 1
      %p87 = por %p85, %p86
      %p88 = scmp.ne.s32.totalorder %s79, %s80
      %p89 = scmp.eq.s32.totalorder %s27, 0
      %p90 = por %p88, %p89
      %p91 = scmp.ne.s32.totalorder %s79, %s80
      %p92 = scmp.eq.s32.totalorder %s28, 1
      %p93 = por %p91, %p92
      %p95 = scmp.ne.s32.totalorder %s80, %s94
      %p96 = scmp.eq.s32.totalorder %s28, 0
      %p97 = por %p95, %p96
      %s99 = sadd.s32 %s98, 1
      %p102 = scmp.eq.s32.totalorder %s22, 1
      %p103 = scmp.ne.s32.totalorder %s98, %s100
      %p104 = scmp.eq.s32.totalorder %s22, 0
      %p105 = por %p103, %p104
      %p106 = scmp.ne.s32.totalorder %s98, %s100
      %p107 = scmp.eq.s32.totalorder %s27, 1
      %p108 = por %p106, %p107
      %p109 = scmp.ne.s32.totalorder %s100, %s101
      %p110 = scmp.eq.s32.totalorder %s27, 0
      %p111 = por %p109, %p110
      %p112 = scmp.ne.s32.totalorder %s100, %s101
      %p113 = scmp.eq.s32.totalorder %s28, 1
      %p114 = por %p112, %p113
      %p116 = scmp.ne.s32.totalorder %s101, %s115
      %p117 = scmp.eq.s32.totalorder %s28, 0
      %p118 = por %p116, %p117
      %s120 = sadd.s32 %s119, 1
      %p123 = scmp.eq.s32.totalorder %s22, 1
      %p124 = scmp.ne.s32.totalorder %s119, %s121
      %p125 = scmp.eq.s32.totalorder %s22, 0
      %p126 = por %p124, %p125
      %p127 = scmp.ne.s32.totalorder %s119, %s121
      %p128 = scmp.eq.s32.totalorder %s27, 1
      %p129 = por %p127, %p128
      %p130 = scmp.ne.s32.totalorder %s121, %s122
      %p131 = scmp.eq.s32.totalorder %s27, 0
      %p132 = por %p130, %p131
      %p133 = scmp.ne.s32.totalorder %s121, %s122
      %p134 = scmp.eq.s32.totalorder %s28, 1
      %p135 = por %p133, %p134
      %p137 = scmp.ne.s32.totalorder %s122, %s136
      %p138 = scmp.eq.s32.totalorder %s28, 0
      %p139 = por %p137, %p138
      %s141 = sadd.s32 %s140, 1
      %p144 = scmp.eq.s32.totalorder %s22, 1
      %p145 = scmp.ne.s32.totalorder %s140, %s142
      %p146 = scmp.eq.s32.totalorder %s22, 0
      %p147 = por %p145, %p146
      %p148 = scmp.ne.s32.totalorder %s140, %s142
      %p149 = scmp.eq.s32.totalorder %s27, 1
      %p150 = por %p148, %p149
      %p151 = scmp.ne.s32.totalorder %s142, %s143
      %p152 = scmp.eq.s32.totalorder %s27, 0
      %p153 = por %p151, %p152
      %p154 = scmp.ne.s32.totalorder %s142, %s143
      %p155 = scmp.eq.s32.totalorder %s28, 1
      %p156 = por %p154, %p155
      %p158 = scmp.ne.s32.totalorder %s143, %s157
      %p159 = scmp.eq.s32.totalorder %s28, 0
      %p160 = por %p158, %p159
      %s162 = sadd.s32 %s161, 1
      %p165 = scmp.eq.s32.totalorder %s22, 1
      %p166 = scmp.ne.s32.totalorder %s161, %s163
      %p167 = scmp.eq.s32.totalorder %s22, 0
      %p168 = por %p166, %p167
      %p169 = scmp.ne.s32.totalorder %s161, %s163
      %p170 = scmp.eq.s32.totalorder %s27, 1
      %p171 = por %p169, %p170
      %p172 = scmp.ne.s32.totalorder %s163, %s164
      %p173 = scmp.eq.s32.totalorder %s27, 0
      %p174 = por %p172, %p173
      %p175 = scmp.ne.s32.totalorder %s163, %s164
      %p176 = scmp.eq.s32.totalorder %s28, 1
      %p177 = por %p175, %p176
      %p179 = scmp.ne.s32.totalorder %s164, %s178
      %p180 = scmp.eq.s32.totalorder %s28, 0
      %p181 = por %p179, %p180
      %s183 = sadd.s32 %s182, 1
      %p186 = scmp.eq.s32.totalorder %s22, 1
      %p187 = scmp.ne.s32.totalorder %s182, %s184
      %p188 = scmp.eq.s32.totalorder %s22, 0
      %p189 = por %p187, %p188
      %p190 = scmp.ne.s32.totalorder %s182, %s184
      %p191 = scmp.eq.s32.totalorder %s27, 1
      %p192 = por %p190, %p191
      %p193 = scmp.ne.s32.totalorder %s184, %s185
      %p194 = scmp.eq.s32.totalorder %s27, 0
      %p195 = por %p193, %p194
      %p196 = scmp.ne.s32.totalorder %s184, %s185
      %p197 = scmp.eq.s32.totalorder %s28, 1
      %p198 = por %p196, %p197
      %p200 = scmp.ne.s32.totalorder %s185, %s199
      %p201 = scmp.eq.s32.totalorder %s28, 0
      %p202 = por %p200, %p201
      %s203 = ssub.s32 %s22, %s29
      %p204 = scmp.eq.s32.totalorder %s203, 0
      %s206 = sadd.s32 %s205, 1
      %s207 = scalar_select %p204, %s205, %s206
      %p210 = pneg %p204
      %p211 = scmp.eq.s32.totalorder %s22, 1
      %p212 = por %p210, %p211
      %p213 = scmp.ne.s32.totalorder %s205, %s208
      %p214 = scmp.eq.s32.totalorder %s22, 0
      %p215 = por %p213, %p214
      %p216 = scmp.ne.s32.totalorder %s205, %s208
      %p217 = scmp.eq.s32.totalorder %s27, 1
      %p218 = por %p216, %p217
      %p219 = scmp.ne.s32.totalorder %s208, %s209
      %p220 = scmp.eq.s32.totalorder %s27, 0
      %p221 = por %p219, %p220
      %p222 = scmp.ne.s32.totalorder %s208, %s209
      %p223 = scmp.eq.s32.totalorder %s28, 1
      %p224 = por %p222, %p223
      %p226 = scmp.ne.s32.totalorder %s209, %s225
      %p227 = scmp.eq.s32.totalorder %s28, 0
      %p228 = por %p226, %p227
      %p229 = scmp.le.s32.totalorder 1, %s22
      %p230 = scmp.lt.s32.totalorder %s22, 3
      %p231 = pnand %p229, %p230
      %p232 = pneg %p231
      // Predicated region
      $region9: #{tpu_custom_call.1} parent=5 // pred_check
        _
      $region10: #{tpu_custom_call.1} parent=5 // pred_check_branch
        %234 = sbr.rel (%p231) target = $region12
      $region11: #{tpu_custom_call.1} parent=5 // pred_region
        %s235 = ssub.s32 %s22, 1
        // Predicated region
        $region13: #{tpu_custom_call.1} parent=11 // pred_check
          %p236 = pneg %p69
        $region14: #{tpu_custom_call.1} parent=11 // pred_check_branch
          %238 = sbr.rel (%p236) target = $region16
        $region15: #{tpu_custom_call.1} parent=11 // pred_region
          _
        $region16: #{tpu_custom_call.1} parent=11 // pred_fallthru
          _
        // Predicated region
        $region17: #{tpu_custom_call.1} parent=11 // pred_check
          %p239 = pneg %p90
        $region18: #{tpu_custom_call.1} parent=11 // pred_check_branch
          %241 = sbr.rel (%p239) target = $region20
        $region19: #{tpu_custom_call.1} parent=11 // pred_region
          _
        $region20: #{tpu_custom_call.1} parent=11 // pred_fallthru
          _
        // Predicated region
        $region21: #{tpu_custom_call.1} parent=11 // pred_check
          %p242 = pneg %p111
        $region22: #{tpu_custom_call.1} parent=11 // pred_check_branch
          %244 = sbr.rel (%p242) target = $region24
        $region23: #{tpu_custom_call.1} parent=11 // pred_region
          _
        $region24: #{tpu_custom_call.1} parent=11 // pred_fallthru
          _
        // Predicated region
        $region25: #{tpu_custom_call.1} parent=11 // pred_check
          %p245 = pneg %p132
        $region26: #{tpu_custom_call.1} parent=11 // pred_check_branch
          %247 = sbr.rel (%p245) target = $region28
        $region27: #{tpu_custom_call.1} parent=11 // pred_region
          _
        $region28: #{tpu_custom_call.1} parent=11 // pred_fallthru
          _
        // Predicated region
        $region29: #{tpu_custom_call.1} parent=11 // pred_check
          %p248 = pneg %p153
        $region30: #{tpu_custom_call.1} parent=11 // pred_check_branch
          %250 = sbr.rel (%p248) target = $region32
        $region31: #{tpu_custom_call.1} parent=11 // pred_region
          %s252 = ssub.s32 16, 16
          %253 = vsyncadd [#allocation9], %s252
          %s255 = sshll.u32 %s5, 4
          %s256 = int_to_ptr.vmem [resolvable:$true] %s255
          %258 = dma.vmem_to_smem %s256, 16, [#allocation10], [#allocation9]
        $region32: #{tpu_custom_call.1} parent=11 // pred_fallthru
          _
        // Predicated region
        $region33: #{tpu_custom_call.1} parent=11 // pred_check
          %p259 = pneg %p174
        $region34: #{tpu_custom_call.1} parent=11 // pred_check_branch
          %261 = sbr.rel (%p259) target = $region36
        $region35: #{tpu_custom_call.1} parent=11 // pred_region
          _
        $region36: #{tpu_custom_call.1} parent=11 // pred_fallthru
          _
        // Predicated region
        $region37: #{tpu_custom_call.1} parent=11 // pred_check
          %p262 = pneg %p195
        $region38: #{tpu_custom_call.1} parent=11 // pred_check_branch
          %264 = sbr.rel (%p262) target = $region40
        $region39: #{tpu_custom_call.1} parent=11 // pred_region
          _
        $region40: #{tpu_custom_call.1} parent=11 // pred_fallthru
          _
      $region12: #{tpu_custom_call.1} parent=5 // pred_fallthru
        _
      %p265 = scmp.lt.s32.totalorder %s22, 2
      // Predicated region
      $region41: #{tpu_custom_call.1} parent=5 // pred_check
        %p266 = pneg %p265
      $region42: #{tpu_custom_call.1} parent=5 // pred_check_branch
        %268 = sbr.rel (%p266) target = $region44
      $region43: #{tpu_custom_call.1} parent=5 // pred_region
        // Predicated region
        $region45: #{tpu_custom_call.1} parent=43 // pred_check
          %p269 = pneg %p42
        $region46: #{tpu_custom_call.1} parent=43 // pred_check_branch
          %271 = sbr.rel (%p269) target = $region48
        $region47: #{tpu_custom_call.1} parent=43 // pred_region
          %s272 = sand.u32 %s32, 1
          %s273 = scalar_lea.sflag [#allocation7], %s272
          %s274 = sand.u32 %s32, 1
          %s275 = smul.addr %s274, 64
          %s276 = scalar_lea.vmem [#allocation6], %s275
          %s278 = ssub.s32 1024, 1024
          %279 = vsyncadd %s273, %s278
          %s280 = smul.addr %s22, 8
          %s281 = smul.addr %s280, 128
          %s282 = scalar_lea.hbm %s0, %s281
          %s283 = sshll.u32 %s276, 4
          %s284 = int_to_ptr.vmem [resolvable:$true] %s283
          %289 = dma.hbm_to_vmem [thread:$0]  %s282, 1024, %s284, %s273, 256, 256, 16
        $region48: #{tpu_custom_call.1} parent=43 // pred_fallthru
          _
      $region44: #{tpu_custom_call.1} parent=5 // pred_fallthru
        _
      %p290 = scmp.le.s32.totalorder 1, %s22
      %p291 = scmp.lt.s32.totalorder %s22, 3
      %p292 = pnand %p290, %p291
      %p293 = pneg %p292
      // Predicated region
      $region49: #{tpu_custom_call.1} parent=5 // pred_check
        _
      $region50: #{tpu_custom_call.1} parent=5 // pred_check_branch
        %295 = sbr.rel (%p292) target = $region52
      $region51: #{tpu_custom_call.1} parent=5 // pred_region
        %s296 = ssub.s32 %s22, 1
        %s297 = sand.u32 %s35, 1
        %s298 = scalar_lea.sflag [#allocation7], %s297
        %s299 = sand.u32 %s35, 1
        %s300 = smul.addr %s299, 64
        %s301 = scalar_lea.vmem [#allocation6], %s300
        // Predicated region
        $region53: #{tpu_custom_call.1} parent=51 // pred_check
          %p302 = pneg %p48
        $region54: #{tpu_custom_call.1} parent=51 // pred_check_branch
          %304 = sbr.rel (%p302) target = $region56
        $region55: #{tpu_custom_call.1} parent=51 // pred_region
          %305 = dma.done %s298, 1024
        $region56: #{tpu_custom_call.1} parent=51 // pred_fallthru
          _
        // Predicated region
        $region57: #{tpu_custom_call.1} parent=51 // pred_check
          %p306 = pneg %p153
        $region58: #{tpu_custom_call.1} parent=51 // pred_check_branch
          %308 = sbr.rel (%p306) target = $region60
        $region59: #{tpu_custom_call.1} parent=51 // pred_region
          %309 = dma.done [#allocation9], 16
        $region60: #{tpu_custom_call.1} parent=51 // pred_fallthru
          _
        %310 = sfence
        %s311 = sand.u32 %s35, 1
        %s312 = scalar_lea.sflag [#allocation7], %s311
        %s313 = sand.u32 %s35, 1
        %s314 = smul.addr %s313, 64
        %s315 = scalar_lea.vmem [#allocation6], %s314
        %p316 = pneg %p48
        %p317 = pneg %p45
        %p318 = pneg %p69
        %p319 = pneg %p66
        %p320 = pneg %p90
        %p321 = pneg %p87
        %p322 = pneg %p111
        %p323 = pneg %p108
        %p324 = pneg %p132
        %p325 = pneg %p129
        %p326 = pneg %p153
        %p327 = pneg %p150
        %p328 = pneg %p174
        %p329 = pneg %p171
        %p330 = pneg %p195
        %p331 = pneg %p192
        %p332 = pneg %p221
        %p333 = pneg %p218
        %s334 = sand.u32 %s208, 1
        %s335 = scalar_lea.sflag [#allocation8], %s334
        %s336 = sand.u32 %s208, 1
        %s337 = smul.addr %s336, 64
        %s338 = scalar_lea.vmem [#allocation11], %s337
        %v339 = vld [vmem:[%s301] sm:$0xff]
        %v340 = vld [vmem:[%s301 + $0x8] sm:$0xff]
        %v341 = vld [vmem:[%s301 + $0x10] sm:$0xff]
        %v342 = vld [vmem:[%s301 + $0x18] sm:$0xff]
        %v343 = vld [vmem:[%s301 + $0x20] sm:$0xff]
        %v344 = vld [vmem:[%s301 + $0x28] sm:$0xff]
        %v345 = vld [vmem:[%s301 + $0x30] sm:$0xff]
        %v346 = vld [vmem:[%s301 + $0x38] sm:$0xff]
        %v347 = vadd.f32 %v339, %v340
        %348 = vadd.xlane.f32.xlu0 %v347
        %v349 = vpop.xlane.xlu0 %348
        %v350 = vadd.f32 %v341, %v342
        %351 = vadd.xlane.f32.xlu0 %v350
        %v352 = vpop.xlane.xlu0 %351
        %v353 = vadd.f32 %v343, %v344
        %354 = vadd.xlane.f32.xlu0 %v353
        %v355 = vpop.xlane.xlu0 %354
        %v356 = vadd.f32 %v345, %v346
        %357 = vadd.xlane.f32.xlu0 %v356
        %v358 = vpop.xlane.xlu0 %357
        %v359 = vrcp.pop 256.0
        %v360 = vmul.f32 %v349, %v359
        %v361 = vmul.f32 %v352, %v359
        %v362 = vmul.f32 %v355, %v359
        %v363 = vmul.f32 %v358, %v359
        %v364 = vmax.f32 %v339, %v340
        %365 = vmax.xlane.f32.xlu0 %v364
        %v366 = vpop.xlane.xlu0 %365
        %v367 = vmax.f32 %v341, %v342
        %368 = vmax.xlane.f32.xlu0 %v367
        %v369 = vpop.xlane.xlu0 %368
        %v370 = vmax.f32 %v343, %v344
        %371 = vmax.xlane.f32.xlu0 %v370
        %v372 = vpop.xlane.xlu0 %371
        %v373 = vmax.f32 %v345, %v346
        %374 = vmax.xlane.f32.xlu0 %v373
        %v375 = vpop.xlane.xlu0 %374
        %vm376 = vcmask 7168
        %v377 = vsel %vm376, %v360, %v366
        %v378 = vsel %vm376, %v361, %v369
        %v379 = vsel %vm376, %v362, %v372
        %v380 = vsel %vm376, %v363, %v375
        %v381 = vld [vmem:[%s1] sm:$0x3]
        %v382 = vld [vmem:[%s2] sm:$0x3]
        %384 = vset.pattern.permute.xlu0 0
        %385 = vperm.xlu0 %384, %v382
        %v386 = vpop.permute.xlu0 %385
        %vm388 = vcmask 261120
        %v390 = vsel %vm388, %v381, 0
        %392 = vmatprep.subr.mxu0 0.0
        %393 = vmatpush1.msra.mxu0 %v377
        %394 = vmatprep.subr.mxu0 0.0
        %395 = vmatpush1.msra.mxu0 %v378
        %396 = vmatprep.subr.mxu0 0.0
        %397 = vmatpush1.msra.mxu0 %v379
        %398 = vmatprep.subr.mxu0 0.0
        %399 = vmatpush1.msra.mxu0 %v380
        %400 = vmatprep.subr.mxu0 0.0
        %401 = vmatpush1.msra.mxu0 0.0
        %402 = vmatprep.subr.mxu0 0.0
        %403 = vmatpush1.msra.mxu0 0.0
        %404 = vmatprep.subr.mxu0 0.0
        %405 = vmatpush1.msra.mxu0 0.0
        %406 = vmatprep.subr.mxu0 0.0
        %407 = vmatpush1.msra.mxu0 0.0
        %408 = vmatprep.subr.mxu0 0.0
        %409 = vmatpush1.msra.mxu0 0.0
        %410 = vmatprep.subr.mxu0 0.0
        %411 = vmatpush1.msra.mxu0 0.0
        %412 = vmatprep.subr.mxu0 0.0
        %413 = vmatpush1.msra.mxu0 0.0
        %414 = vmatprep.subr.mxu0 0.0
        %415 = vmatpush1.msra.mxu0 0.0
        %416 = vmatprep.subr.mxu0 0.0
        %417 = vmatpush1.msra.mxu0 0.0
        %418 = vmatprep.subr.mxu0 0.0
        %419 = vmatpush1.msra.mxu0 0.0
        %420 = vmatprep.subr.mxu0 0.0
        %421 = vmatpush1.msra.mxu0 0.0
        %422 = vmatprep.subr.mxu0 0.0
        %423 = vmatpush1.msra.mxu0 0.0
        %424 = vmatprep.subr.mxu0 0.0
        %425 = vmatpush1.msra.mxu0 0.0
        %426 = vmatprep.subr.mxu0 0.0
        %427 = vmatpush1.msra.mxu0 0.0
        %428 = vmatprep.subr.mxu0 0.0
        %429 = vmatpush1.msra.mxu0 0.0
        %430 = vmatprep.subr.mxu0 0.0
        %431 = vmatpush1.msra.mxu0 0.0
        %432 = vmatprep.subr.mxu0 0.0
        %433 = vmatpush1.msra.mxu0 0.0
        %434 = vmatprep.subr.mxu0 0.0
        %435 = vmatpush1.msra.mxu0 0.0
        %436 = vmatprep.subr.mxu0 0.0
        %437 = vmatpush1.msra.mxu0 0.0
        %438 = vmatprep.subr.mxu0 0.0
        %439 = vmatpush1.msra.mxu0 0.0
        %440 = vmatprep.subr.mxu0 0.0
        %441 = vmatpush1.msra.mxu0 0.0
        %442 = vmatprep.subr.mxu0 0.0
        %443 = vmatpush1.msra.mxu0 0.0
        %444 = vmatprep.subr.mxu0 0.0
        %445 = vmatpush1.msra.mxu0 0.0
        %446 = vmatprep.subr.mxu0 0.0
        %447 = vmatpush1.msra.mxu0 0.0
        %448 = vmatprep.subr.mxu0 0.0
        %449 = vmatpush1.msra.mxu0 0.0
        %450 = vmatprep.subr.mxu0 0.0
        %451 = vmatpush1.msra.mxu0 0.0
        %452 = vmatprep.subr.mxu0 0.0
        %453 = vmatpush1.msra.mxu0 0.0
        %454 = vmatprep.subr.mxu0 0.0
        %455 = vmatpush1.msra.mxu0 0.0
        %456 = vmatprep.mubr.f32.mxu0 0.0
        %457 = vmatmul.mubr.f32.gmra.mrb[0].mxu0 %v390
        %v458 = vpop.f32.mrb[0].mxu0
        %v459 = vadd.f32 %v386, %v458
        %v460 = vpop.f32.mrb[0].mxu0
        %461 = vdwg.mxu0
        %v462 = vmax.f32 %v459, 0.0
        %v463 = vld [vmem:[%s3] sm:$0xff]
        %v464 = vld [vmem:[%s3 + $0x8] sm:$0xff]
        %v465 = vld [vmem:[%s3 + $0x10] sm:$0xff]
        %v466 = vld [vmem:[%s3 + $0x18] sm:$0xff]
        %v467 = vld [vmem:[%s4] sm:$0xff]
        %v468 = vld [vmem:[%s4 + $0x8] sm:$0xff]
        %v469 = vld [vmem:[%s4 + $0x10] sm:$0xff]
        %v470 = vld [vmem:[%s4 + $0x18] sm:$0xff]
        %472 = vset.pattern.permute.xlu0 0
        %473 = vperm.xlu0 %472, %v467
        %v474 = vpop.permute.xlu0 %473
        %477 = vset.pattern.permute.xlu0 0
        %478 = vperm.xlu0 %477, %v468
        %v479 = vpop.permute.xlu0 %478
        %482 = vset.pattern.permute.xlu0 0
        %483 = vperm.xlu0 %482, %v469
        %v484 = vpop.permute.xlu0 %483
        %487 = vset.pattern.permute.xlu0 0
        %488 = vperm.xlu0 %487, %v470
        %v489 = vpop.permute.xlu0 %488
        %vm491 = vcmask 15360
        %v493 = vsel %vm491, %v463, 0
        %v496 = vsel %vm491, %v464, 0
        %v499 = vsel %vm491, %v465, 0
        %v502 = vsel %vm491, %v466, 0
        %vm504 = vcmask 1041408
        %v506 = vsel %vm504, %v462, 0
        %508 = vmatprep.subr.mxu0 0.0
        %509 = vmatpush1.msra.mxu0 %v506
        %510 = vmatprep.subr.mxu0 0.0
        %511 = vmatpush1.msra.mxu0 0.0
        %512 = vmatprep.subr.mxu0 0.0
        %513 = vmatpush1.msra.mxu0 0.0
        %514 = vmatprep.subr.mxu0 0.0
        %515 = vmatpush1.msra.mxu0 0.0
        %516 = vmatprep.subr.mxu0 0.0
        %517 = vmatpush1.msra.mxu0 0.0
        %518 = vmatprep.subr.mxu0 0.0
        %519 = vmatpush1.msra.mxu0 0.0
        %520 = vmatprep.subr.mxu0 0.0
        %521 = vmatpush1.msra.mxu0 0.0
        %522 = vmatprep.subr.mxu0 0.0
        %523 = vmatpush1.msra.mxu0 0.0
        %524 = vmatprep.subr.mxu0 0.0
        %525 = vmatpush1.msra.mxu0 0.0
        %526 = vmatprep.subr.mxu0 0.0
        %527 = vmatpush1.msra.mxu0 0.0
        %528 = vmatprep.subr.mxu0 0.0
        %529 = vmatpush1.msra.mxu0 0.0
        %530 = vmatprep.subr.mxu0 0.0
        %531 = vmatpush1.msra.mxu0 0.0
        %532 = vmatprep.subr.mxu0 0.0
        %533 = vmatpush1.msra.mxu0 0.0
        %534 = vmatprep.subr.mxu0 0.0
        %535 = vmatpush1.msra.mxu0 0.0
        %536 = vmatprep.subr.mxu0 0.0
        %537 = vmatpush1.msra.mxu0 0.0
        %538 = vmatprep.subr.mxu0 0.0
        %539 = vmatpush1.msra.mxu0 0.0
        %540 = vmatprep.subr.mxu0 0.0
        %541 = vmatpush1.msra.mxu0 0.0
        %542 = vmatprep.subr.mxu0 0.0
        %543 = vmatpush1.msra.mxu0 0.0
        %544 = vmatprep.subr.mxu0 0.0
        %545 = vmatpush1.msra.mxu0 0.0
        %546 = vmatprep.subr.mxu0 0.0
        %547 = vmatpush1.msra.mxu0 0.0
        %548 = vmatprep.subr.mxu0 0.0
        %549 = vmatpush1.msra.mxu0 0.0
        %550 = vmatprep.subr.mxu0 0.0
        %551 = vmatpush1.msra.mxu0 0.0
        %552 = vmatprep.subr.mxu0 0.0
        %553 = vmatpush1.msra.mxu0 0.0
        %554 = vmatprep.subr.mxu0 0.0
        %555 = vmatpush1.msra.mxu0 0.0
        %556 = vmatprep.subr.mxu0 0.0
        %557 = vmatpush1.msra.mxu0 0.0
        %558 = vmatprep.subr.mxu0 0.0
        %559 = vmatpush1.msra.mxu0 0.0
        %560 = vmatprep.subr.mxu0 0.0
        %561 = vmatpush1.msra.mxu0 0.0
        %562 = vmatprep.subr.mxu0 0.0
        %563 = vmatpush1.msra.mxu0 0.0
        %564 = vmatprep.subr.mxu0 0.0
        %565 = vmatpush1.msra.mxu0 0.0
        %566 = vmatprep.subr.mxu0 0.0
        %567 = vmatpush1.msra.mxu0 0.0
        %568 = vmatprep.subr.mxu0 0.0
        %569 = vmatpush1.msra.mxu0 0.0
        %570 = vmatprep.subr.mxu0 0.0
        %571 = vmatpush1.msra.mxu0 0.0
        %572 = vmatprep.mubr.f32.mxu0 0.0
        %573 = vmatmul.mubr.f32.gmra.mrb[0].mxu0 %v493
        %v574 = vpop.f32.mrb[0].mxu0
        %v575 = vadd.f32 %v474, %v574
        %v576 = vpop.f32.mrb[0].mxu0
        %577 = vmatprep.mubr.f32.mxu0 0.0
        %578 = vmatmul.mubr.f32.gmra.mrb[0].mxu0 %v496
        %v579 = vpop.f32.mrb[0].mxu0
        %v580 = vadd.f32 %v479, %v579
        %v581 = vpop.f32.mrb[0].mxu0
        %582 = vmatprep.mubr.f32.mxu0 0.0
        %583 = vmatmul.mubr.f32.gmra.mrb[0].mxu0 %v499
        %v584 = vpop.f32.mrb[0].mxu0
        %v585 = vadd.f32 %v484, %v584
        %v586 = vpop.f32.mrb[0].mxu0
        %587 = vmatprep.mubr.f32.mxu0 0.0
        %588 = vmatmul.mubr.f32.gmra.mrb[0].mxu0 %v502
        %v589 = vpop.f32.mrb[0].mxu0
        %v590 = vadd.f32 %v489, %v589
        %v591 = vpop.f32.mrb[0].mxu0
        %592 = vdwg.mxu0
        %597 = vrot.lane.b32.xlu0 %v575, 127
        %v598 = vpop.permute.xlu0 %597
        %599 = vrot.lane.b32.xlu0 %v580, 127
        %v600 = vpop.permute.xlu0 %599
        %601 = vrot.lane.b32.xlu0 %v585, 127
        %v602 = vpop.permute.xlu0 %601
        %603 = vrot.lane.b32.xlu0 %v590, 127
        %v604 = vpop.permute.xlu0 %603
        %v609 = vadd.f32 %v575, %v598
        %v610 = vadd.f32 %v580, %v600
        %v611 = vadd.f32 %v585, %v602
        %v612 = vadd.f32 %v590, %v604
        %v613 = vxor.u32 %v609, 2147483648
        %v614 = vxor.u32 %v610, 2147483648
        %v615 = vxor.u32 %v611, 2147483648
        %v616 = vxor.u32 %v612, 2147483648
        %v617 = vmul.f32 %v613, 1.442695
        %v618 = vpow.pop %v617
        %v619 = vmul.f32 %v614, 1.442695
        %v620 = vpow.pop %v619
        %v621 = vmul.f32 %v615, 1.442695
        %v622 = vpow.pop %v621
        %v623 = vmul.f32 %v616, 1.442695
        %v624 = vpow.pop %v623
        %v625 = vadd.f32 %v618, 1.0
        %v626 = vadd.f32 %v620, 1.0
        %v627 = vadd.f32 %v622, 1.0
        %v628 = vadd.f32 %v624, 1.0
        %v629 = vrcp.pop %v625
        %v630 = vmul.f32 1.0, %v629
        %v631 = vrcp.pop %v626
        %v632 = vmul.f32 1.0, %v631
        %v633 = vrcp.pop %v627
        %v634 = vmul.f32 1.0, %v633
        %v635 = vrcp.pop %v628
        %v636 = vmul.f32 1.0, %v635
        %638 = vset.pattern.permute.xlu0 0
        %639 = vperm.xlu0 %638, %v630
        %v640 = vpop.permute.xlu0 %639
        %643 = vset.pattern.permute.xlu0 0
        %644 = vperm.xlu0 %643, %v632
        %v645 = vpop.permute.xlu0 %644
        %648 = vset.pattern.permute.xlu0 0
        %649 = vperm.xlu0 %648, %v634
        %v650 = vpop.permute.xlu0 %649
        %653 = vset.pattern.permute.xlu0 0
        %654 = vperm.xlu0 %653, %v636
        %v655 = vpop.permute.xlu0 %654
        %v657 = vmul.f32 %v339, %v640
        %v658 = vmul.f32 %v340, %v640
        %v659 = vmul.f32 %v341, %v645
        %v660 = vmul.f32 %v342, %v645
        %v661 = vmul.f32 %v343, %v650
        %v662 = vmul.f32 %v344, %v650
        %v663 = vmul.f32 %v345, %v655
        %v664 = vmul.f32 %v346, %v655
        %665 = vst [vmem:[#allocation2] sm:$0xff] %v657
        %666 = vst [vmem:[#allocation2 + $0x8] sm:$0xff] %v658
        %667 = vst [vmem:[#allocation2 + $0x10] sm:$0xff] %v659
        %668 = vst [vmem:[#allocation2 + $0x18] sm:$0xff] %v660
        %669 = vst [vmem:[#allocation2 + $0x20] sm:$0xff] %v661
        %670 = vst [vmem:[#allocation2 + $0x28] sm:$0xff] %v662
        %671 = vst [vmem:[#allocation2 + $0x30] sm:$0xff] %v663
        %672 = vst [vmem:[#allocation2 + $0x38] sm:$0xff] %v664
        %v673 = vld [vmem:[#allocation2] sm:$0xff]
        %v674 = vld [vmem:[#allocation2 + $0x8] sm:$0xff]
        %v675 = vld [vmem:[#allocation2 + $0x10] sm:$0xff]
        %v676 = vld [vmem:[#allocation2 + $0x18] sm:$0xff]
        %v677 = vld [vmem:[#allocation2 + $0x20] sm:$0xff]
        %v678 = vld [vmem:[#allocation2 + $0x28] sm:$0xff]
        %v679 = vld [vmem:[#allocation2 + $0x30] sm:$0xff]
        %v680 = vld [vmem:[#allocation2 + $0x38] sm:$0xff]
        %v681 = vadd.f32 %v673, %v675
        %v682 = vadd.f32 %v681, %v677
        %v683 = vadd.f32 %v682, %v679
        %v684 = vrot.slane %v683, 4
        %v685 = vadd.f32 %v683, %v684
        %v686 = vrot.slane %v685, 2
        %v687 = vadd.f32 %v685, %v686
        %v688 = vrot.slane %v687, 1
        %v689 = vadd.f32 %v687, %v688
        %v690 = vadd.f32 %v674, %v676
        %v691 = vadd.f32 %v690, %v678
        %v692 = vadd.f32 %v691, %v680
        %v693 = vrot.slane %v692, 4
        %v694 = vadd.f32 %v692, %v693
        %v695 = vrot.slane %v694, 2
        %v696 = vadd.f32 %v694, %v695
        %v697 = vrot.slane %v696, 1
        %v698 = vadd.f32 %v696, %v697
        %v699 = vrcp.pop 32.0
        %v700 = vmul.f32 %v689, %v699
        %v701 = vmul.f32 %v698, %v699
        %v704 = vcombine.low %v700, %v701
        %v706 = vunpack.c.l.s4 1966171168
        %v707 = vunpack.c.0.s8 %v706
        %v708 = vlaneseq
        %v709 = vshrl.u32 %v708, 7
        %v710 = vsub.s32 %v707, %v709
        %v711 = vrot.slane %v704, %v710
        %v713 = vunpack.c.l.s4 1966171168
        %v714 = vunpack.c.0.s8 %v713
        %v715 = vlaneseq
        %v716 = vshrl.u32 %v715, 7
        %v717 = vsub.s32 %v714, %v716
        %v718 = vrot.slane %v711, %v717
        %v720 = vlaneseq
        %vm721 = vcmp.ge.s32.totalorder %v720, 0
        %vm722 = vcmp.lt.s32.totalorder %v720, 256
        %vm723 = vmand %vm721, %vm722
        %724 = vst.msk [vmem:[#allocation3] sm:$0x3] %vm723, %v718
        %v725 = vmax.f32 %v673, %v677
        %v726 = vmax.f32 %v675, %v679
        %v727 = vmax.f32 %v725, %v726
        %v728 = vrot.slane %v727, 4
        %v729 = vmax.f32 %v727, %v728
        %v730 = vrot.slane %v729, 2
        %v731 = vmax.f32 %v729, %v730
        %v732 = vrot.slane %v731, 1
        %v733 = vmax.f32 %v731, %v732
        %v734 = vmax.f32 %v674, %v678
        %v735 = vmax.f32 %v676, %v680
        %v736 = vmax.f32 %v734, %v735
        %v737 = vrot.slane %v736, 4
        %v738 = vmax.f32 %v736, %v737
        %v739 = vrot.slane %v738, 2
        %v740 = vmax.f32 %v738, %v739
        %v741 = vrot.slane %v740, 1
        %v742 = vmax.f32 %v740, %v741
        %v745 = vcombine.low %v733, %v742
        %v747 = vunpack.c.l.s4 1966171168
        %v748 = vunpack.c.0.s8 %v747
        %v749 = vlaneseq
        %v750 = vshrl.u32 %v749, 7
        %v751 = vsub.s32 %v748, %v750
        %v752 = vrot.slane %v745, %v751
        %v754 = vunpack.c.l.s4 1966171168
        %v755 = vunpack.c.0.s8 %v754
        %v756 = vlaneseq
        %v757 = vshrl.u32 %v756, 7
        %v758 = vsub.s32 %v755, %v757
        %v759 = vrot.slane %v752, %v758
        %761 = vst.msk [vmem:[#allocation4] sm:$0x3] %vm723, %v759
        %v762 = vld [vmem:[#allocation3] sm:$0x3]
        %v763 = vld [vmem:[#allocation4] sm:$0x3]
        %s764 = sld [smem:[#allocation10]]
        %v765 = vstv %s764
        %v766 = vmul.f32 %v765, %v762
        %s767 = sld [smem:[#allocation10 + $0x9]]
        %v768 = vstv %s767
        %v769 = vmul.f32 %v768, %v763
        %v770 = vadd.f32 %v766, %v769
        %v772 = vlaneseq
        %v773 = vshrl.u32 %v772, 7
        %v774 = vsub.s32 0, %v773
        %v775 = vrot.slane %v770, %v774
        %v776 = vlaneseq
        %v777 = vshrl.u32 %v776, 7
        %v778 = vsub.s32 1, %v777
        %v779 = vrot.slane %v770, %v778
        %782 = vrot.lane.b32.xlu0 %v775, 17
        %v783 = vpop.permute.xlu0 %782
        %784 = vrot.lane.b32.xlu0 %v779, 17
        %v785 = vpop.permute.xlu0 %784
        %v786 = vlaneseq
        %v787 = vand.u32 %v786, 127
        %vm788 = vcmp.lt.s32.totalorder %v787, 17
        %v789 = vsel %vm788, %v783, %v785
        %v790 = vsel %vm788, %v785, %v783
        %v791 = vld [vmem:[%s7] ss:$8 sm:$0x3]
        %v794 = vcombine.low %v790, %v789
        %v796 = vunpack.c.l.s4 1966171168
        %v797 = vunpack.c.0.s8 %v796
        %v798 = vlaneseq
        %v799 = vshrl.u32 %v798, 7
        %v800 = vsub.s32 %v797, %v799
        %v801 = vrot.slane %v794, %v800
        %v803 = vunpack.c.l.s4 1966171168
        %v804 = vunpack.c.0.s8 %v803
        %v805 = vlaneseq
        %v806 = vshrl.u32 %v805, 7
        %v807 = vsub.s32 %v804, %v806
        %v808 = vrot.slane %v801, %v807
        %v810 = vmul.f32 %v791, %v808
        %v811 = vadd.f32 %v810, 0.0
        %s812 = sld [smem:[#allocation10 + $0x1]]
        %v813 = vstv %s812
        %v814 = vmul.f32 %v813, %v762
        %s815 = sld [smem:[#allocation10 + $0xa]]
        %v816 = vstv %s815
        %v817 = vmul.f32 %v816, %v763
        %v818 = vadd.f32 %v814, %v817
        %v820 = vlaneseq
        %v821 = vshrl.u32 %v820, 7
        %v822 = vsub.s32 0, %v821
        %v823 = vrot.slane %v818, %v822
        %v824 = vlaneseq
        %v825 = vshrl.u32 %v824, 7
        %v826 = vsub.s32 1, %v825
        %v827 = vrot.slane %v818, %v826
        %830 = vrot.lane.b32.xlu0 %v823, 16
        %v831 = vpop.permute.xlu0 %830
        %832 = vrot.lane.b32.xlu0 %v827, 16
        %v833 = vpop.permute.xlu0 %832
        %vm834 = vcmp.lt.s32.totalorder %v787, 16
        %v835 = vsel %vm834, %v831, %v833
        %v836 = vsel %vm834, %v833, %v831
        %s837 = scalar_lea.vmem %s7, 1
        %v838 = vld [vmem:[%s837] ss:$8 sm:$0x3]
        %v841 = vcombine.low %v836, %v835
        %v843 = vunpack.c.l.s4 1966171168
        %v844 = vunpack.c.0.s8 %v843
        %v845 = vlaneseq
        %v846 = vshrl.u32 %v845, 7
        %v847 = vsub.s32 %v844, %v846
        %v848 = vrot.slane %v841, %v847
        %v850 = vunpack.c.l.s4 1966171168
        %v851 = vunpack.c.0.s8 %v850
        %v852 = vlaneseq
        %v853 = vshrl.u32 %v852, 7
        %v854 = vsub.s32 %v851, %v853
        %v855 = vrot.slane %v848, %v854
        %v857 = vmul.f32 %v838, %v855
        %v858 = vadd.f32 %v811, %v857
        %s859 = sld [smem:[#allocation10 + $0x2]]
        %v860 = vstv %s859
        %v861 = vmul.f32 %v860, %v762
        %s862 = sld [smem:[#allocation10 + $0xb]]
        %v863 = vstv %s862
        %v864 = vmul.f32 %v863, %v763
        %v865 = vadd.f32 %v861, %v864
        %v867 = vlaneseq
        %v868 = vshrl.u32 %v867, 7
        %v869 = vsub.s32 0, %v868
        %v870 = vrot.slane %v865, %v869
        %v871 = vlaneseq
        %v872 = vshrl.u32 %v871, 7
        %v873 = vsub.s32 1, %v872
        %v874 = vrot.slane %v865, %v873
        %877 = vrot.lane.b32.xlu0 %v870, 15
        %v878 = vpop.permute.xlu0 %877
        %879 = vrot.lane.b32.xlu0 %v874, 15
        %v880 = vpop.permute.xlu0 %879
        %vm881 = vcmp.lt.s32.totalorder %v787, 15
        %v882 = vsel %vm881, %v878, %v880
        %v883 = vsel %vm881, %v880, %v878
        %s884 = scalar_lea.vmem %s7, 2
        %v885 = vld [vmem:[%s884] ss:$8 sm:$0x3]
        %v888 = vcombine.low %v883, %v882
        %v890 = vunpack.c.l.s4 1966171168
        %v891 = vunpack.c.0.s8 %v890
        %v892 = vlaneseq
        %v893 = vshrl.u32 %v892, 7
        %v894 = vsub.s32 %v891, %v893
        %v895 = vrot.slane %v888, %v894
        %v897 = vunpack.c.l.s4 1966171168
        %v898 = vunpack.c.0.s8 %v897
        %v899 = vlaneseq
        %v900 = vshrl.u32 %v899, 7
        %v901 = vsub.s32 %v898, %v900
        %v902 = vrot.slane %v895, %v901
        %v904 = vmul.f32 %v885, %v902
        %v905 = vadd.f32 %v858, %v904
        %s906 = sld [smem:[#allocation10 + $0x3]]
        %v907 = vstv %s906
        %v908 = vmul.f32 %v907, %v762
        %s909 = sld [smem:[#allocation10 + $0xc]]
        %v910 = vstv %s909
        %v911 = vmul.f32 %v910, %v763
        %v912 = vadd.f32 %v908, %v911
        %v914 = vlaneseq
        %v915 = vshrl.u32 %v914, 7
        %v916 = vsub.s32 0, %v915
        %v917 = vrot.slane %v912, %v916
        %v918 = vlaneseq
        %v919 = vshrl.u32 %v918, 7
        %v920 = vsub.s32 1, %v919
        %v921 = vrot.slane %v912, %v920
        %924 = vrot.lane.b32.xlu0 %v917, 1
        %v925 = vpop.permute.xlu0 %924
        %926 = vrot.lane.b32.xlu0 %v921, 1
        %v927 = vpop.permute.xlu0 %926
        %vm928 = vcmp.lt.s32.totalorder %v787, 1
        %v929 = vsel %vm928, %v925, %v927
        %v930 = vsel %vm928, %v927, %v925
        %s931 = scalar_lea.vmem %s7, 3
        %v932 = vld [vmem:[%s931] ss:$8 sm:$0x3]
        %v935 = vcombine.low %v930, %v929
        %v937 = vunpack.c.l.s4 1966171168
        %v938 = vunpack.c.0.s8 %v937
        %v939 = vlaneseq
        %v940 = vshrl.u32 %v939, 7
        %v941 = vsub.s32 %v938, %v940
        %v942 = vrot.slane %v935, %v941
        %v944 = vunpack.c.l.s4 1966171168
        %v945 = vunpack.c.0.s8 %v944
        %v946 = vlaneseq
        %v947 = vshrl.u32 %v946, 7
        %v948 = vsub.s32 %v945, %v947
        %v949 = vrot.slane %v942, %v948
        %v951 = vmul.f32 %v932, %v949
        %v952 = vadd.f32 %v905, %v951
        %s953 = sld [smem:[#allocation10 + $0x4]]
        %v954 = vstv %s953
        %v955 = vmul.f32 %v954, %v762
        %s956 = sld [smem:[#allocation10 + $0xd]]
        %v957 = vstv %s956
        %v958 = vmul.f32 %v957, %v763
        %v959 = vadd.f32 %v955, %v958
        %s960 = scalar_lea.vmem %s7, 4
        %v961 = vld [vmem:[%s960] ss:$8 sm:$0x3]
        %v962 = vmul.f32 %v961, %v959
        %v963 = vadd.f32 %v952, %v962
        %s964 = sld [smem:[#allocation10 + $0x5]]
        %v965 = vstv %s964
        %v966 = vmul.f32 %v965, %v762
        %s967 = sld [smem:[#allocation10 + $0xe]]
        %v968 = vstv %s967
        %v969 = vmul.f32 %v968, %v763
        %v970 = vadd.f32 %v966, %v969
        %v972 = vlaneseq
        %v973 = vshrl.u32 %v972, 7
        %v974 = vsub.s32 0, %v973
        %v975 = vrot.slane %v970, %v974
        %v976 = vlaneseq
        %v977 = vshrl.u32 %v976, 7
        %v978 = vsub.s32 1, %v977
        %v979 = vrot.slane %v970, %v978
        %982 = vrot.lane.b32.xlu0 %v975, 127
        %v983 = vpop.permute.xlu0 %982
        %984 = vrot.lane.b32.xlu0 %v979, 127
        %v985 = vpop.permute.xlu0 %984
        %vm986 = vcmp.lt.s32.totalorder %v787, 127
        %v987 = vsel %vm986, %v983, %v985
        %v988 = vsel %vm986, %v985, %v983
        %s989 = scalar_lea.vmem %s7, 5
        %v990 = vld [vmem:[%s989] ss:$8 sm:$0x3]
        %v993 = vcombine.low %v987, %v988
        %v995 = vunpack.c.l.s4 1966171168
        %v996 = vunpack.c.0.s8 %v995
        %v997 = vlaneseq
        %v998 = vshrl.u32 %v997, 7
        %v999 = vsub.s32 %v996, %v998
        %v1000 = vrot.slane %v993, %v999
        %v1002 = vunpack.c.l.s4 1966171168
        %v1003 = vunpack.c.0.s8 %v1002
        %v1004 = vlaneseq
        %v1005 = vshrl.u32 %v1004, 7
        %v1006 = vsub.s32 %v1003, %v1005
        %v1007 = vrot.slane %v1000, %v1006
        %v1009 = vmul.f32 %v990, %v1007
        %v1010 = vadd.f32 %v963, %v1009
        %s1011 = sld [smem:[#allocation10 + $0x6]]
        %v1012 = vstv %s1011
        %v1013 = vmul.f32 %v1012, %v762
        %s1014 = sld [smem:[#allocation10 + $0xf]]
        %v1015 = vstv %s1014
        %v1016 = vmul.f32 %v1015, %v763
        %v1017 = vadd.f32 %v1013, %v1016
        %v1019 = vlaneseq
        %v1020 = vshrl.u32 %v1019, 7
        %v1021 = vsub.s32 0, %v1020
        %v1022 = vrot.slane %v1017, %v1021
        %v1023 = vlaneseq
        %v1024 = vshrl.u32 %v1023, 7
        %v1025 = vsub.s32 1, %v1024
        %v1026 = vrot.slane %v1017, %v1025
        %1029 = vrot.lane.b32.xlu0 %v1022, 113
        %v1030 = vpop.permute.xlu0 %1029
        %1031 = vrot.lane.b32.xlu0 %v1026, 113
        %v1032 = vpop.permute.xlu0 %1031
        %vm1033 = vcmp.lt.s32.totalorder %v787, 113
        %v1034 = vsel %vm1033, %v1030, %v1032
        %v1035 = vsel %vm1033, %v1032, %v1030
        %s1036 = scalar_lea.vmem %s7, 6
        %v1037 = vld [vmem:[%s1036] ss:$8 sm:$0x3]
        %v1040 = vcombine.low %v1034, %v1035
        %v1042 = vunpack.c.l.s4 1966171168
        %v1043 = vunpack.c.0.s8 %v1042
        %v1044 = vlaneseq
        %v1045 = vshrl.u32 %v1044, 7
        %v1046 = vsub.s32 %v1043, %v1045
        %v1047 = vrot.slane %v1040, %v1046
        %v1049 = vunpack.c.l.s4 1966171168
        %v1050 = vunpack.c.0.s8 %v1049
        %v1051 = vlaneseq
        %v1052 = vshrl.u32 %v1051, 7
        %v1053 = vsub.s32 %v1050, %v1052
        %v1054 = vrot.slane %v1047, %v1053
        %v1056 = vmul.f32 %v1037, %v1054
        %v1057 = vadd.f32 %v1010, %v1056
        %s1058 = sld [smem:[#allocation10 + $0x7]]
        %v1059 = vstv %s1058
        %v1060 = vmul.f32 %v1059, %v762
        %s1061 = sld [smem:[#allocation10 + $0x10]]
        %v1062 = vstv %s1061
        %v1063 = vmul.f32 %v1062, %v763
        %v1064 = vadd.f32 %v1060, %v1063
        %v1066 = vlaneseq
        %v1067 = vshrl.u32 %v1066, 7
        %v1068 = vsub.s32 0, %v1067
        %v1069 = vrot.slane %v1064, %v1068
        %v1070 = vlaneseq
        %v1071 = vshrl.u32 %v1070, 7
        %v1072 = vsub.s32 1, %v1071
        %v1073 = vrot.slane %v1064, %v1072
        %1076 = vrot.lane.b32.xlu0 %v1069, 112
        %v1077 = vpop.permute.xlu0 %1076
        %1078 = vrot.lane.b32.xlu0 %v1073, 112
        %v1079 = vpop.permute.xlu0 %1078
        %vm1080 = vcmp.lt.s32.totalorder %v787, 112
        %v1081 = vsel %vm1080, %v1077, %v1079
        %v1082 = vsel %vm1080, %v1079, %v1077
        %s1083 = scalar_lea.vmem %s7, 7
        %v1084 = vld [vmem:[%s1083] ss:$8 sm:$0x3]
        %v1087 = vcombine.low %v1081, %v1082
        %v1089 = vunpack.c.l.s4 1966171168
        %v1090 = vunpack.c.0.s8 %v1089
        %v1091 = vlaneseq
        %v1092 = vshrl.u32 %v1091, 7
        %v1093 = vsub.s32 %v1090, %v1092
        %v1094 = vrot.slane %v1087, %v1093
        %v1096 = vunpack.c.l.s4 1966171168
        %v1097 = vunpack.c.0.s8 %v1096
        %v1098 = vlaneseq
        %v1099 = vshrl.u32 %v1098, 7
        %v1100 = vsub.s32 %v1097, %v1099
        %v1101 = vrot.slane %v1094, %v1100
        %v1103 = vmul.f32 %v1084, %v1101
        %v1104 = vadd.f32 %v1057, %v1103
        %s1105 = sld [smem:[#allocation10 + $0x8]]
        %v1106 = vstv %s1105
        %v1107 = vmul.f32 %v1106, %v762
        %s1108 = sld [smem:[#allocation10 + $0x11]]
        %v1109 = vstv %s1108
        %v1110 = vmul.f32 %v1109, %v763
        %v1111 = vadd.f32 %v1107, %v1110
        %v1113 = vlaneseq
        %v1114 = vshrl.u32 %v1113, 7
        %v1115 = vsub.s32 0, %v1114
        %v1116 = vrot.slane %v1111, %v1115
        %v1117 = vlaneseq
        %v1118 = vshrl.u32 %v1117, 7
        %v1119 = vsub.s32 1, %v1118
        %v1120 = vrot.slane %v1111, %v1119
        %1123 = vrot.lane.b32.xlu0 %v1116, 111
        %v1124 = vpop.permute.xlu0 %1123
        %1125 = vrot.lane.b32.xlu0 %v1120, 111
        %v1126 = vpop.permute.xlu0 %1125
        %vm1127 = vcmp.lt.s32.totalorder %v787, 111
        %v1128 = vsel %vm1127, %v1124, %v1126
        %v1129 = vsel %vm1127, %v1126, %v1124
        %s1130 = scalar_lea.vmem %s7, 16
        %v1131 = vld [vmem:[%s1130] ss:$8 sm:$0x3]
        %v1134 = vcombine.low %v1128, %v1129
        %v1136 = vunpack.c.l.s4 1966171168
        %v1137 = vunpack.c.0.s8 %v1136
        %v1138 = vlaneseq
        %v1139 = vshrl.u32 %v1138, 7
        %v1140 = vsub.s32 %v1137, %v1139
        %v1141 = vrot.slane %v1134, %v1140
        %v1143 = vunpack.c.l.s4 1966171168
        %v1144 = vunpack.c.0.s8 %v1143
        %v1145 = vlaneseq
        %v1146 = vshrl.u32 %v1145, 7
        %v1147 = vsub.s32 %v1144, %v1146
        %v1148 = vrot.slane %v1141, %v1147
        %v1150 = vmul.f32 %v1131, %v1148
        %v1151 = vadd.f32 %v1104, %v1150
        %s1152 = sld [smem:[#allocation5]]
        %v1153 = vstv %s1152
        %v1154 = vadd.f32 %v1151, %v1153
        %v1155 = vxor.u32 %v1154, 2147483648
        %v1156 = vmul.f32 %v1155, 1.442695
        %v1157 = vpow.pop %v1156
        %v1158 = vadd.f32 %v1157, 1.0
        %v1159 = vrcp.pop %v1158
        %v1160 = vmul.f32 1.0, %v1159
        %v1161 = vld [vmem:[#allocation2] sm:$0xff]
        %v1162 = vld [vmem:[#allocation2 + $0x8] sm:$0xff]
        %v1163 = vld [vmem:[#allocation2 + $0x10] sm:$0xff]
        %v1164 = vld [vmem:[#allocation2 + $0x18] sm:$0xff]
        %v1165 = vld [vmem:[#allocation2 + $0x20] sm:$0xff]
        %v1166 = vld [vmem:[#allocation2 + $0x28] sm:$0xff]
        %v1167 = vld [vmem:[#allocation2 + $0x30] sm:$0xff]
        %v1168 = vld [vmem:[#allocation2 + $0x38] sm:$0xff]
        %v1170 = vlaneseq
        %v1171 = vshrl.u32 %v1170, 7
        %v1172 = vsub.s32 0, %v1171
        %v1173 = vrot.slane %v1160, %v1172
        %v1174 = vlaneseq
        %v1175 = vshrl.u32 %v1174, 7
        %v1176 = vsub.s32 1, %v1175
        %v1177 = vrot.slane %v1160, %v1176
        %v1180 = vmul.f32 %v1161, %v1173
        %v1181 = vmul.f32 %v1162, %v1177
        %v1182 = vmul.f32 %v1163, %v1173
        %v1183 = vmul.f32 %v1164, %v1177
        %v1184 = vmul.f32 %v1165, %v1173
        %v1185 = vmul.f32 %v1166, %v1177
        %v1186 = vmul.f32 %v1167, %v1173
        %v1187 = vmul.f32 %v1168, %v1177
        %1188 = vst [vmem:[%s338] sm:$0xff] %v1180
        %1189 = vst [vmem:[%s338 + $0x8] sm:$0xff] %v1181
        %1190 = vst [vmem:[%s338 + $0x10] sm:$0xff] %v1182
        %1191 = vst [vmem:[%s338 + $0x18] sm:$0xff] %v1183
        %1192 = vst [vmem:[%s338 + $0x20] sm:$0xff] %v1184
        %1193 = vst [vmem:[%s338 + $0x28] sm:$0xff] %v1185
        %1194 = vst [vmem:[%s338 + $0x30] sm:$0xff] %v1186
        %1195 = vst [vmem:[%s338 + $0x38] sm:$0xff] %v1187
        %s1196 = sand.u32 %s208, 1
        %s1197 = scalar_lea.sflag [#allocation8], %s1196
        %s1198 = sand.u32 %s208, 1
        %s1199 = smul.addr %s1198, 64
        %s1200 = scalar_lea.vmem [#allocation11], %s1199
        // Predicated region
        $region61: #{tpu_custom_call.1} parent=51 // pred_check
          %p1201 = pneg %p218
        $region62: #{tpu_custom_call.1} parent=51 // pred_check_branch
          %1203 = sbr.rel (%p1201) target = $region64
        $region63: #{tpu_custom_call.1} parent=51 // pred_region
          %s1205 = ssub.s32 1024, 1024
          %1206 = vsyncadd %s1197, %s1205
          %s1207 = smul.addr %s27, 8
          %s1208 = smul.addr %s1207, 128
          %s1209 = scalar_lea.hbm %s8, %s1208
          %s1210 = sshll.u32 %s1200, 4
          %s1211 = int_to_ptr.vmem [resolvable:$true] %s1210
          %1216 = dma.vmem_to_hbm [thread:$0]  %s1211, 1024, %s1209, %s1197, 256, 256, 16
        $region64: #{tpu_custom_call.1} parent=51 // pred_fallthru
          _
      $region52: #{tpu_custom_call.1} parent=5 // pred_fallthru
        _
      %p1217 = scmp.le.s32.totalorder 2, %s22
      // Predicated region
      $region65: #{tpu_custom_call.1} parent=5 // pred_check
        %p1218 = pneg %p1217
      $region66: #{tpu_custom_call.1} parent=5 // pred_check_branch
        %1220 = sbr.rel (%p1218) target = $region68
      $region67: #{tpu_custom_call.1} parent=5 // pred_region
        %s1221 = ssub.s32 %s22, 2
        // Predicated region
        $region69: #{tpu_custom_call.1} parent=67 // pred_check
          %p1222 = pneg %p224
        $region70: #{tpu_custom_call.1} parent=67 // pred_check_branch
          %1224 = sbr.rel (%p1222) target = $region72
        $region71: #{tpu_custom_call.1} parent=67 // pred_region
          %s1225 = sand.u32 %s209, 1
          %s1226 = scalar_lea.sflag [#allocation8], %s1225
          %s1227 = sand.u32 %s209, 1
          %s1228 = smul.addr %s1227, 64
          %s1229 = scalar_lea.vmem [#allocation11], %s1228
          %1230 = dma.done %s1226, 1024
        $region72: #{tpu_custom_call.1} parent=67 // pred_fallthru
          _
      $region68: #{tpu_custom_call.1} parent=5 // pred_fallthru
        _
    $region6: #{tpu_custom_call.1} parent=1 // loop_footer
      %s26 = sadd.s32 1, %s22
    $region7: #{tpu_custom_call.1} parent=1 // loop_footer_branch
      %21 = sbr.rel target = $region3
    $region8: #{tpu_custom_call.1} parent=1 // loop_exit
      _
    %1231 = vsyncpa [#allocation7], 1
    %s1232 = scalar_lea.sflag [#allocation7], 1
    %1233 = vsyncpa %s1232, 1
    %1234 = vsyncpa [#allocation8], 1
    %s1235 = scalar_lea.sflag [#allocation8], 1
    %1236 = vsyncpa %s1235, 1
    %1237 = vsyncpa [#allocation9], 1
    %s1238 = scalar_lea.sflag [#allocation9], 1
    %1239 = vsyncpa %s1238, 1

</llo_original>
